<compile_context>
chip_gen: v5e
topology: v5e:2x2
jax: 0.10.0
libtpu: 0.0.40
codegen_flags: <defaults>
</compile_context>

<pallas_src>
import jax
import jax.numpy as jnp
from jax.experimental import pallas as pl
from jax.experimental.pallas import tpu as pltpu

batch_size = 32
block_size = 8
vocab_size = 65  # synthetic stand-in for len(set(text)) of tiny-shakespeare


# --------------------------------------------------------------------------- #
# Kernels
# --------------------------------------------------------------------------- #
def _logits_loss_kernel(idx_ref, tgt_ref, emb_ref, logits_ref, loss_ref):
    """Training path mirroring forward(idx, targets): padded logits + mean CE."""
    N, VP = logits_ref.shape

    idx = idx_ref[...]                                            # (N, 1) int32
    tgt = tgt_ref[...]                                            # (N, 1) int32
    vocab_ids = jax.lax.broadcasted_iota(jnp.int32, (N, VP), 1)   # (N, VP)

    # Embedding lookup as one-hot matmul on the MXU (table resident in VMEM).
    onehot = (idx == vocab_ids).astype(jnp.float32)               # (N, VP)
    logits = jnp.dot(onehot, emb_ref[...],
                     preferred_element_type=jnp.float32,
                     precision=jax.lax.Precision.HIGHEST)         # (N, VP)
    logits_ref[...] = logits                                      # pad lanes = -1e30

    # Cross-entropy: pad lanes already hold -1e30 (baked into the table), so
    # the logsumexp needs no extra masking; exp of pad lanes underflows to 0.
    m = jnp.max(logits, axis=-1, keepdims=True)                   # (N, 1)
    lse = m + jnp.log(jnp.sum(jnp.exp(logits - m),
                              axis=-1, keepdims=True))            # (N, 1)
    # Targets are always < vocab, so they never select a pad lane.
    picked = jnp.sum(jnp.where(tgt == vocab_ids, logits, 0.0),
                     axis=-1, keepdims=True)                      # (N, 1)
    loss_ref[0, 0] = jnp.sum(lse - picked) * (1.0 / N)


def _loss_only_kernel(idx_ref, tgt_ref, emb_ref, loss_ref):
    """Loss-only training path: no (N, VP) logits store / writeback DMA."""
    N = idx_ref.shape[0]
    VP = emb_ref.shape[1]

    idx = idx_ref[...]
    tgt = tgt_ref[...]
    vocab_ids = jax.lax.broadcasted_iota(jnp.int32, (N, VP), 1)

    onehot = (idx == vocab_ids).astype(jnp.float32)
    logits = jnp.dot(onehot, emb_ref[...],
                     preferred_element_type=jnp.float32,
                     precision=jax.lax.Precision.HIGHEST)

    m = jnp.max(logits, axis=-1, keepdims=True)
    lse = m + jnp.log(jnp.sum(jnp.exp(logits - m), axis=-1, keepdims=True))
    picked = jnp.sum(jnp.where(tgt == vocab_ids, logits, 0.0),
                     axis=-1, keepdims=True)
    loss_ref[0, 0] = jnp.sum(lse - picked) * (1.0 / N)


def _logits_kernel(idx_ref, emb_ref, logits_ref):
    """Inference path: padded logits only (no target DMA, no CE math)."""
    N, VP = logits_ref.shape
    idx = idx_ref[...]                                            # (N, 1) int32
    vocab_ids = jax.lax.broadcasted_iota(jnp.int32, (N, VP), 1)   # (N, VP)
    onehot = (idx == vocab_ids).astype(jnp.float32)               # (N, VP)
    logits_ref[...] = jnp.dot(onehot, emb_ref[...],
                              preferred_element_type=jnp.float32,
                              precision=jax.lax.Precision.HIGHEST)


# --------------------------------------------------------------------------- #
# Wrappers
# --------------------------------------------------------------------------- #
def pad_embedding(emb):
    """Pad the (V, V) table to (VP, VP).  Call ONCE per parameter update.

    Pad rows are 0 (never selected by the one-hot); pad columns are -1e30 so
    the gathered logits come out with -1e30 in pad lanes and the in-kernel
    cross-entropy needs no masking.
    """
    V = emb.shape[0]
    VP = 128 * pl.cdiv(V, 128)
    emb_p = jnp.pad(emb.astype(jnp.float32), ((0, VP - V), (0, 0)))
    emb_p = jnp.pad(emb_p, ((0, 0), (0, VP - V)), constant_values=-1e30)
    return emb_p


def bigram_logits(idx, emb_p):
    """Padded (N, 128) logits for a flattened (B*T,) or (B, T) index array."""
    idx_flat = idx.reshape(-1).astype(jnp.int32)
    N = idx_flat.shape[0]
    VP = emb_p.shape[1]
    return pl.pallas_call(
        _logits_kernel,
        out_shape=jax.ShapeDtypeStruct((N, VP), jnp.float32),
        in_specs=[
            pl.BlockSpec((N, 1), lambda: (0, 0)),
            pl.BlockSpec((VP, VP), lambda: (0, 0)),
        ],
        out_specs=pl.BlockSpec((N, VP), lambda: (0, 0)),
    )(idx_flat.reshape(N, 1), emb_p)


def bigram_last_logits(idx, emb_p):
    """generate() hot path: logits for only the last position per sequence.

    Returns (B, 128) padded logits; pad lanes hold -1e30 so a softmax over the
    full 128 lanes is already correct (exp underflows to 0).
    """
    return bigram_logits(idx[:, -1], emb_p)


def bigram_loss(idx, targets, emb_p):
    """Scalar mean cross-entropy only (no logits output / writeback)."""
    N = idx.size
    VP = emb_p.shape[1]
    idx_col = idx.reshape(N, 1).astype(jnp.int32)
    tgt_col = targets.reshape(N, 1).astype(jnp.int32)
    loss = pl.pallas_call(
        _loss_only_kernel,
        out_shape=jax.ShapeDtypeStruct((1, 1), jnp.float32),
        in_specs=[
            pl.BlockSpec((N, 1), lambda: (0, 0)),
            pl.BlockSpec((N, 1), lambda: (0, 0)),
            pl.BlockSpec((VP, VP), lambda: (0, 0)),
        ],
        out_specs=pl.BlockSpec(memory_space=pltpu.SMEM),
    )(idx_col, tgt_col, emb_p)
    return loss[0, 0]


def bigram_forward(idx, emb_p, targets=None):
    """Mirrors BigramLanguageModel.forward on a pre-padded table.

    Returns lane-padded logits (last dim 128, pad lanes hold -1e30); slice
    [..., :vocab_size] at the final consumer if the exact-width view is needed.
      targets is None  -> logits (B, T, 128), loss None
      targets given    -> logits (B*T, 128), scalar loss
    """
    B, T = idx.shape
    VP = emb_p.shape[1]

    if targets is None:
        logits_p = bigram_logits(idx, emb_p)
        return logits_p.reshape(B, T, VP), None

    N = B * T
    idx_col = idx.reshape(N, 1).astype(jnp.int32)
    tgt_col = targets.reshape(N, 1).astype(jnp.int32)

    logits_p, loss = pl.pallas_call(
        _logits_loss_kernel,
        out_shape=(
            jax.ShapeDtypeStruct((N, VP), jnp.float32),
            jax.ShapeDtypeStruct((1, 1), jnp.float32),
        ),
        in_specs=[
            pl.BlockSpec((N, 1), lambda: (0, 0)),
            pl.BlockSpec((N, 1), lambda: (0, 0)),
            pl.BlockSpec((VP, VP), lambda: (0, 0)),
        ],
        out_specs=(
            pl.BlockSpec((N, VP), lambda: (0, 0)),
            pl.BlockSpec(memory_space=pltpu.SMEM),   # scalar loss on scalar path
        ),
    )(idx_col, tgt_col, emb_p)

    return logits_p, loss[0, 0]


# --------------------------------------------------------------------------- #
# Test
# --------------------------------------------------------------------------- #
if __name__ == "__main__":
    key = jax.random.PRNGKey(0)
    k_emb, k_idx, k_tgt = jax.random.split(key, 3)

    # nn.Embedding default init ~ N(0, 1)
    emb = jax.random.normal(k_emb, (vocab_size, vocab_size), dtype=jnp.float32)
    idx = jax.random.randint(k_idx, (batch_size, block_size), 0, vocab_size,
                             dtype=jnp.int32)
    targets = jax.random.randint(k_tgt, (batch_size, block_size), 0, vocab_size,
                                 dtype=jnp.int32)

    # Pad the parameter once, outside the per-step hot path.
    emb_p = pad_embedding(emb)

    N = batch_size * block_size
    V = vocab_size

    # Training path: logits + loss
    logits_p, loss = bigram_forward(idx, emb_p, targets)
    logits_p = jax.block_until_ready(logits_p)
    loss = jax.block_until_ready(loss)

    # Loss-only path (no logits writeback)
    loss_only = jax.block_until_ready(bigram_loss(idx, targets, emb_p))

    # Inference path: full-sequence logits, loss None
    logits_inf_p, loss_none = bigram_forward(idx, emb_p)
    logits_inf_p = jax.block_until_ready(logits_inf_p)

    # generate() hot path: last-position-only logits
    last_p = jax.block_until_ready(bigram_last_logits(idx, emb_p))

    # Pure-JAX reference (embedding gather + cross-entropy)
    ref_logits = emb[idx.reshape(-1)]                             # (N, V)
    ref_lse = jax.scipy.special.logsumexp(ref_logits, axis=-1)
    ref_loss = jnp.mean(ref_lse - ref_logits[jnp.arange(N), targets.reshape(-1)])

    assert logits_p.shape == (N, 128)
    assert jnp.allclose(logits_p[:, :V], ref_logits, atol=1e-5)
    assert jnp.allclose(loss, ref_loss, atol=1e-5)
    assert jnp.allclose(loss_only, ref_loss, atol=1e-5)

    assert loss_none is None
    assert logits_inf_p.shape == (batch_size, block_size, 128)
    assert jnp.allclose(logits_inf_p.reshape(N, 128)[:, :V], ref_logits, atol=1e-5)

    assert last_p.shape == (batch_size, 128)
    assert jnp.allclose(last_p[:, :V], emb[idx[:, -1]], atol=1e-5)

    # TODO(synk): generate()'s multinomial sampling loop is host-side control
    # flow, not a kernel hot path; only forward()/logits/loss run in Pallas.
    print("KERNEL_OK")
</pallas_src>

<mosaic_0001>
module attributes {stable_mosaic.version = 11 : i64} {
  func.func @_logits_loss_kernel(%arg0: memref<256x1xi32, #tpu.memory_space<vmem>>, %arg1: memref<256x1xi32, #tpu.memory_space<vmem>>, %arg2: memref<128x128xf32, #tpu.memory_space<vmem>>, %arg3: memref<256x128xf32, #tpu.memory_space<vmem>>, %arg4: memref<1x1xf32, #tpu.memory_space<smem>>) attributes {dimension_semantics = [], scalar_prefetch = 0 : i64, scratch_operands = 0 : i64, tpu.core_type = #tpu.core_type<tc>} {
    %c0 = arith.constant 0 : index
    %c0_0 = arith.constant 0 : index
    %0 = vector.load %arg0[%c0, %c0_0] : memref<256x1xi32, #tpu.memory_space<vmem>>, vector<256x1xi32>
    %c0_1 = arith.constant 0 : index
    %c0_2 = arith.constant 0 : index
    %1 = vector.load %arg1[%c0_1, %c0_2] : memref<256x1xi32, #tpu.memory_space<vmem>>, vector<256x1xi32>
    %2 = tpu.iota {dimensions = array<i32: 1>} : vector<256x128xi32>
    %3 = vector.broadcast %0 : vector<256x1xi32> to vector<256x128xi32>
    %4 = arith.cmpi eq, %3, %2 : vector<256x128xi32>
    %5 = arith.extui %4 : vector<256x128xi1> to vector<256x128xi32>
    %6 = arith.sitofp %5 : vector<256x128xi32> to vector<256x128xf32>
    %c0_3 = arith.constant 0 : index
    %c0_4 = arith.constant 0 : index
    %7 = vector.load %arg2[%c0_3, %c0_4] : memref<128x128xf32, #tpu.memory_space<vmem>>, vector<128x128xf32>
    %cst = arith.constant dense<0.000000e+00> : vector<256x128xf32>
    %8 = tpu.matmul %6, %7, %cst {dimension_numbers = #tpu.dot_dimension_numbers<[1], [0], [0], [1], [0, 0, 1, 1], [], []>, precision = #tpu.contract_precision<fp32>} : vector<256x128xf32>, vector<128x128xf32>, vector<256x128xf32> -> vector<256x128xf32>
    %c0_5 = arith.constant 0 : index
    %c0_6 = arith.constant 0 : index
    %9 = vector.load %arg3[%c0_5, %c0_6] : memref<256x128xf32, #tpu.memory_space<vmem>>, vector<256x128xf32>
    tpu.vector_store %arg3[%c0_5, %c0_6], %8 {strides = array<i32>} : memref<256x128xf32, #tpu.memory_space<vmem>>, vector<256x128xf32>,
    %cst_7 = arith.constant dense<0xFF800000> : vector<256xf32>
    %10 = vector.multi_reduction <maximumf>, %8, %cst_7 [1] : vector<256x128xf32> to vector<256xf32>
    %11 = vector.shape_cast %10 : vector<256xf32> to vector<256x1xf32>
    %12 = vector.broadcast %11 : vector<256x1xf32> to vector<256x128xf32>
    %13 = arith.subf %8, %12 : vector<256x128xf32>
    %14 = math.exp %13 : vector<256x128xf32>
    %cst_8 = arith.constant dense<0.000000e+00> : vector<256xf32>
    %15 = vector.multi_reduction <add>, %14, %cst_8 [1] : vector<256x128xf32> to vector<256xf32>
    %16 = vector.shape_cast %15 : vector<256xf32> to vector<256x1xf32>
    %17 = math.log %16 : vector<256x1xf32>
    %18 = arith.addf %11, %17 : vector<256x1xf32>
    %19 = vector.broadcast %1 : vector<256x1xi32> to vector<256x128xi32>
    %20 = arith.cmpi eq, %19, %2 : vector<256x128xi32>
    %cst_9 = arith.constant 0.000000e+00 : f32
    %21 = vector.broadcast %cst_9 : f32 to vector<256x128xf32>
    %22 = arith.select %20, %8, %21 : vector<256x128xi1>, vector<256x128xf32>
    %cst_10 = arith.constant dense<0.000000e+00> : vector<256xf32>
    %23 = vector.multi_reduction <add>, %22, %cst_10 [1] : vector<256x128xf32> to vector<256xf32>
    %24 = vector.shape_cast %23 : vector<256xf32> to vector<256x1xf32>
    %25 = arith.subf %18, %24 : vector<256x1xf32>
    %26 = vector.shape_cast %25 : vector<256x1xf32> to vector<1x256x1xf32>
    %cst_11 = arith.constant dense<0.000000e+00> : vector<1xf32>
    %27 = vector.multi_reduction <add>, %26, %cst_11 [1, 2] : vector<1x256x1xf32> to vector<1xf32>
    %28 = vector.shape_cast %27 : vector<1xf32> to vector<1x1x1xf32>
    %29 = vector.extract %28[0, 0, 0] : f32 from vector<1x1x1xf32>
    %cst_12 = arith.constant 3.906250e-03 : f32
    %30 = arith.mulf %29, %cst_12 : f32
    %c0_13 = arith.constant 0 : index
    %c0_14 = arith.constant 0 : index
    %31 = memref.load %arg4[%c0_13, %c0_14] : memref<1x1xf32, #tpu.memory_space<smem>>
    memref.store %30, %arg4[%c0_13, %c0_14] : memref<1x1xf32, #tpu.memory_space<smem>>
    return
  }
}

</mosaic_0001>

<llo_original>
// kernel: tpu_custom_call.1
$region0: #{tpu_custom_call.1}
  #allocation0 [shape = 'u32[]', space=smem, size = 0x4, offset = 0x4, fixed_abs, tag = 'smem constant byte address 0x4 - core index']
  #allocation1 [shape = 'u32[72,128]{1,0:T(1,128)}', space=vmem, size = 0x9000, scoped, tag = 'internal scratch']
  %s0 = inlined_call_operand.vmem [shape: s32[256,1], index: 0, kind: input, shape index: {}]
  %s1 = inlined_call_operand.vmem [shape: s32[256,1], index: 1, kind: input, shape index: {}]
  %s2 = inlined_call_operand.vmem [shape: f32[128,128], index: 2, kind: input, shape index: {}]
  %s3 = inlined_call_operand.hbm [shape: f32[256,128], index: 3, kind: output, shape index: {0}]
  %s4 = inlined_call_operand.hbm [shape: f32[1,1], index: 4, kind: output, shape index: {1}]
  %5 = xla_tuple %s3, %s4
  %s6 = sld [smem:[#allocation0]]
  $region30: #{tpu_custom_call.1} parent=0
    _
  %s8 = ssub.s32 1, %s6
  %s9 = scalar_select 0, %s8, %s6
  $region1: #{tpu_custom_call.1} parent=0
    #allocation2 [shape = 'u8[131072]{0}', space=vmem, size = 0x20000, scoped, tag = 'output window, operand 0, single buffered']
    #allocation3 [shape = 's32[1]{0}', space=sflag, size = 0x4, scoped, tag = 'scoped memory for tpu_custom_call.1']
    #allocation4 [shape = 's32[1]{0}', space=sflag, size = 0x4, scoped, tag = 'scoped memory for tpu_custom_call.1']
    #allocation5 [shape = 'u8[512]{0}', space=smem, size = 0x200, scoped, tag = 'output window, operand 1, single buffered']
    %10 = vsyncpa [#allocation3], 0
    %11 = vsyncpa [#allocation4], 0
    // Predicated region
    $region2: #{tpu_custom_call.1} parent=1 // pred_check
      _
    $region3: #{tpu_custom_call.1} parent=1 // pred_check_branch
      %13 = sbr.rel (0) target = $region5
    $region4: #{tpu_custom_call.1} parent=1 // pred_region
      _
    $region5: #{tpu_custom_call.1} parent=1 // pred_fallthru
      _
    // Predicated region
    $region6: #{tpu_custom_call.1} parent=1 // pred_check
      _
    $region7: #{tpu_custom_call.1} parent=1 // pred_check_branch
      %15 = sbr.rel (0) target = $region9
    $region8: #{tpu_custom_call.1} parent=1 // pred_region
      _
    $region9: #{tpu_custom_call.1} parent=1 // pred_fallthru
      _
    // Predicated region
    $region10: #{tpu_custom_call.1} parent=1 // pred_check
      _
    $region11: #{tpu_custom_call.1} parent=1 // pred_check_branch
      %17 = sbr.rel (0) target = $region13
    $region12: #{tpu_custom_call.1} parent=1 // pred_region
      _
    $region13: #{tpu_custom_call.1} parent=1 // pred_fallthru
      _
    %v18 = vld [vmem:[%s0] sm:$0xff]
    %v19 = vld [vmem:[%s0 + $0x8] sm:$0xff]
    %v20 = vld [vmem:[%s0 + $0x10] sm:$0xff]
    %v21 = vld [vmem:[%s0 + $0x18] sm:$0xff]
    %v22 = vld [vmem:[%s0 + $0x20] sm:$0xff]
    %v23 = vld [vmem:[%s0 + $0x28] sm:$0xff]
    %v24 = vld [vmem:[%s0 + $0x30] sm:$0xff]
    %v25 = vld [vmem:[%s0 + $0x38] sm:$0xff]
    %v26 = vld [vmem:[%s0 + $0x40] sm:$0xff]
    %v27 = vld [vmem:[%s0 + $0x48] sm:$0xff]
    %v28 = vld [vmem:[%s0 + $0x50] sm:$0xff]
    %v29 = vld [vmem:[%s0 + $0x58] sm:$0xff]
    %v30 = vld [vmem:[%s0 + $0x60] sm:$0xff]
    %v31 = vld [vmem:[%s0 + $0x68] sm:$0xff]
    %v32 = vld [vmem:[%s0 + $0x70] sm:$0xff]
    %v33 = vld [vmem:[%s0 + $0x78] sm:$0xff]
    %v34 = vld [vmem:[%s0 + $0x80] sm:$0xff]
    %v35 = vld [vmem:[%s0 + $0x88] sm:$0xff]
    %v36 = vld [vmem:[%s0 + $0x90] sm:$0xff]
    %v37 = vld [vmem:[%s0 + $0x98] sm:$0xff]
    %v38 = vld [vmem:[%s0 + $0xa0] sm:$0xff]
    %v39 = vld [vmem:[%s0 + $0xa8] sm:$0xff]
    %v40 = vld [vmem:[%s0 + $0xb0] sm:$0xff]
    %v41 = vld [vmem:[%s0 + $0xb8] sm:$0xff]
    %v42 = vld [vmem:[%s0 + $0xc0] sm:$0xff]
    %v43 = vld [vmem:[%s0 + $0xc8] sm:$0xff]
    %v44 = vld [vmem:[%s0 + $0xd0] sm:$0xff]
    %v45 = vld [vmem:[%s0 + $0xd8] sm:$0xff]
    %v46 = vld [vmem:[%s0 + $0xe0] sm:$0xff]
    %v47 = vld [vmem:[%s0 + $0xe8] sm:$0xff]
    %v48 = vld [vmem:[%s0 + $0xf0] sm:$0xff]
    %v49 = vld [vmem:[%s0 + $0xf8] sm:$0xff]
    %v50 = vld [vmem:[%s1] sm:$0xff]
    %v51 = vld [vmem:[%s1 + $0x8] sm:$0xff]
    %v52 = vld [vmem:[%s1 + $0x10] sm:$0xff]
    %v53 = vld [vmem:[%s1 + $0x18] sm:$0xff]
    %v54 = vld [vmem:[%s1 + $0x20] sm:$0xff]
    %v55 = vld [vmem:[%s1 + $0x28] sm:$0xff]
    %v56 = vld [vmem:[%s1 + $0x30] sm:$0xff]
    %v57 = vld [vmem:[%s1 + $0x38] sm:$0xff]
    %v58 = vld [vmem:[%s1 + $0x40] sm:$0xff]
    %v59 = vld [vmem:[%s1 + $0x48] sm:$0xff]
    %v60 = vld [vmem:[%s1 + $0x50] sm:$0xff]
    %v61 = vld [vmem:[%s1 + $0x58] sm:$0xff]
    %v62 = vld [vmem:[%s1 + $0x60] sm:$0xff]
    %v63 = vld [vmem:[%s1 + $0x68] sm:$0xff]
    %v64 = vld [vmem:[%s1 + $0x70] sm:$0xff]
    %v65 = vld [vmem:[%s1 + $0x78] sm:$0xff]
    %v66 = vld [vmem:[%s1 + $0x80] sm:$0xff]
    %v67 = vld [vmem:[%s1 + $0x88] sm:$0xff]
    %v68 = vld [vmem:[%s1 + $0x90] sm:$0xff]
    %v69 = vld [vmem:[%s1 + $0x98] sm:$0xff]
    %v70 = vld [vmem:[%s1 + $0xa0] sm:$0xff]
    %v71 = vld [vmem:[%s1 + $0xa8] sm:$0xff]
    %v72 = vld [vmem:[%s1 + $0xb0] sm:$0xff]
    %v73 = vld [vmem:[%s1 + $0xb8] sm:$0xff]
    %v74 = vld [vmem:[%s1 + $0xc0] sm:$0xff]
    %v75 = vld [vmem:[%s1 + $0xc8] sm:$0xff]
    %v76 = vld [vmem:[%s1 + $0xd0] sm:$0xff]
    %v77 = vld [vmem:[%s1 + $0xd8] sm:$0xff]
    %v78 = vld [vmem:[%s1 + $0xe0] sm:$0xff]
    %v79 = vld [vmem:[%s1 + $0xe8] sm:$0xff]
    %v80 = vld [vmem:[%s1 + $0xf0] sm:$0xff]
    %v81 = vld [vmem:[%s1 + $0xf8] sm:$0xff]
    %v82 = vlaneseq
    %v83 = vand.u32 %v82, 127
    %84 = vset.pattern.permute.xlu0 0
    %85 = vperm.xlu0 %84, %v18
    %v86 = vpop.permute.xlu0 %85
    %87 = vset.pattern.permute.xlu0 0
    %88 = vperm.xlu0 %87, %v19
    %v89 = vpop.permute.xlu0 %88
    %90 = vset.pattern.permute.xlu0 0
    %91 = vperm.xlu0 %90, %v20
    %v92 = vpop.permute.xlu0 %91
    %93 = vset.pattern.permute.xlu0 0
    %94 = vperm.xlu0 %93, %v21
    %v95 = vpop.permute.xlu0 %94
    %96 = vset.pattern.permute.xlu0 0
    %97 = vperm.xlu0 %96, %v22
    %v98 = vpop.permute.xlu0 %97
    %99 = vset.pattern.permute.xlu0 0
    %100 = vperm.xlu0 %99, %v23
    %v101 = vpop.permute.xlu0 %100
    %102 = vset.pattern.permute.xlu0 0
    %103 = vperm.xlu0 %102, %v24
    %v104 = vpop.permute.xlu0 %103
    %105 = vset.pattern.permute.xlu0 0
    %106 = vperm.xlu0 %105, %v25
    %v107 = vpop.permute.xlu0 %106
    %108 = vset.pattern.permute.xlu0 0
    %109 = vperm.xlu0 %108, %v26
    %v110 = vpop.permute.xlu0 %109
    %111 = vset.pattern.permute.xlu0 0
    %112 = vperm.xlu0 %111, %v27
    %v113 = vpop.permute.xlu0 %112
    %114 = vset.pattern.permute.xlu0 0
    %115 = vperm.xlu0 %114, %v28
    %v116 = vpop.permute.xlu0 %115
    %117 = vset.pattern.permute.xlu0 0
    %118 = vperm.xlu0 %117, %v29
    %v119 = vpop.permute.xlu0 %118
    %120 = vset.pattern.permute.xlu0 0
    %121 = vperm.xlu0 %120, %v30
    %v122 = vpop.permute.xlu0 %121
    %123 = vset.pattern.permute.xlu0 0
    %124 = vperm.xlu0 %123, %v31
    %v125 = vpop.permute.xlu0 %124
    %126 = vset.pattern.permute.xlu0 0
    %127 = vperm.xlu0 %126, %v32
    %v128 = vpop.permute.xlu0 %127
    %129 = vset.pattern.permute.xlu0 0
    %130 = vperm.xlu0 %129, %v33
    %v131 = vpop.permute.xlu0 %130
    %132 = vset.pattern.permute.xlu0 0
    %133 = vperm.xlu0 %132, %v34
    %v134 = vpop.permute.xlu0 %133
    %135 = vset.pattern.permute.xlu0 0
    %136 = vperm.xlu0 %135, %v35
    %v137 = vpop.permute.xlu0 %136
    %138 = vset.pattern.permute.xlu0 0
    %139 = vperm.xlu0 %138, %v36
    %v140 = vpop.permute.xlu0 %139
    %141 = vset.pattern.permute.xlu0 0
    %142 = vperm.xlu0 %141, %v37
    %v143 = vpop.permute.xlu0 %142
    %144 = vset.pattern.permute.xlu0 0
    %145 = vperm.xlu0 %144, %v38
    %v146 = vpop.permute.xlu0 %145
    %147 = vset.pattern.permute.xlu0 0
    %148 = vperm.xlu0 %147, %v39
    %v149 = vpop.permute.xlu0 %148
    %150 = vset.pattern.permute.xlu0 0
    %151 = vperm.xlu0 %150, %v40
    %v152 = vpop.permute.xlu0 %151
    %153 = vset.pattern.permute.xlu0 0
    %154 = vperm.xlu0 %153, %v41
    %v155 = vpop.permute.xlu0 %154
    %156 = vset.pattern.permute.xlu0 0
    %157 = vperm.xlu0 %156, %v42
    %v158 = vpop.permute.xlu0 %157
    %159 = vset.pattern.permute.xlu0 0
    %160 = vperm.xlu0 %159, %v43
    %v161 = vpop.permute.xlu0 %160
    %162 = vset.pattern.permute.xlu0 0
    %163 = vperm.xlu0 %162, %v44
    %v164 = vpop.permute.xlu0 %163
    %165 = vset.pattern.permute.xlu0 0
    %166 = vperm.xlu0 %165, %v45
    %v167 = vpop.permute.xlu0 %166
    %168 = vset.pattern.permute.xlu0 0
    %169 = vperm.xlu0 %168, %v46
    %v170 = vpop.permute.xlu0 %169
    %171 = vset.pattern.permute.xlu0 0
    %172 = vperm.xlu0 %171, %v47
    %v173 = vpop.permute.xlu0 %172
    %174 = vset.pattern.permute.xlu0 0
    %175 = vperm.xlu0 %174, %v48
    %v176 = vpop.permute.xlu0 %175
    %177 = vset.pattern.permute.xlu0 0
    %178 = vperm.xlu0 %177, %v49
    %v179 = vpop.permute.xlu0 %178
    %vm180 = vcmp.eq.s32.totalorder %v86, %v83
    %vm181 = vcmp.eq.s32.totalorder %v89, %v83
    %vm182 = vcmp.eq.s32.totalorder %v92, %v83
    %vm183 = vcmp.eq.s32.totalorder %v95, %v83
    %vm184 = vcmp.eq.s32.totalorder %v98, %v83
    %vm185 = vcmp.eq.s32.totalorder %v101, %v83
    %vm186 = vcmp.eq.s32.totalorder %v104, %v83
    %vm187 = vcmp.eq.s32.totalorder %v107, %v83
    %vm188 = vcmp.eq.s32.totalorder %v110, %v83
    %vm189 = vcmp.eq.s32.totalorder %v113, %v83
    %vm190 = vcmp.eq.s32.totalorder %v116, %v83
    %vm191 = vcmp.eq.s32.totalorder %v119, %v83
    %vm192 = vcmp.eq.s32.totalorder %v122, %v83
    %vm193 = vcmp.eq.s32.totalorder %v125, %v83
    %vm194 = vcmp.eq.s32.totalorder %v128, %v83
    %vm195 = vcmp.eq.s32.totalorder %v131, %v83
    %vm196 = vcmp.eq.s32.totalorder %v134, %v83
    %vm197 = vcmp.eq.s32.totalorder %v137, %v83
    %vm198 = vcmp.eq.s32.totalorder %v140, %v83
    %vm199 = vcmp.eq.s32.totalorder %v143, %v83
    %vm200 = vcmp.eq.s32.totalorder %v146, %v83
    %vm201 = vcmp.eq.s32.totalorder %v149, %v83
    %vm202 = vcmp.eq.s32.totalorder %v152, %v83
    %vm203 = vcmp.eq.s32.totalorder %v155, %v83
    %vm204 = vcmp.eq.s32.totalorder %v158, %v83
    %vm205 = vcmp.eq.s32.totalorder %v161, %v83
    %vm206 = vcmp.eq.s32.totalorder %v164, %v83
    %vm207 = vcmp.eq.s32.totalorder %v167, %v83
    %vm208 = vcmp.eq.s32.totalorder %v170, %v83
    %vm209 = vcmp.eq.s32.totalorder %v173, %v83
    %vm210 = vcmp.eq.s32.totalorder %v176, %v83
    %vm211 = vcmp.eq.s32.totalorder %v179, %v83
    %v212 = vsel %vm180, 1, 0
    %v213 = vsel %vm181, 1, 0
    %v214 = vsel %vm182, 1, 0
    %v215 = vsel %vm183, 1, 0
    %v216 = vsel %vm184, 1, 0
    %v217 = vsel %vm185, 1, 0
    %v218 = vsel %vm186, 1, 0
    %v219 = vsel %vm187, 1, 0
    %v220 = vsel %vm188, 1, 0
    %v221 = vsel %vm189, 1, 0
    %v222 = vsel %vm190, 1, 0
    %v223 = vsel %vm191, 1, 0
    %v224 = vsel %vm192, 1, 0
    %v225 = vsel %vm193, 1, 0
    %v226 = vsel %vm194, 1, 0
    %v227 = vsel %vm195, 1, 0
    %v228 = vsel %vm196, 1, 0
    %v229 = vsel %vm197, 1, 0
    %v230 = vsel %vm198, 1, 0
    %v231 = vsel %vm199, 1, 0
    %v232 = vsel %vm200, 1, 0
    %v233 = vsel %vm201, 1, 0
    %v234 = vsel %vm202, 1, 0
    %v235 = vsel %vm203, 1, 0
    %v236 = vsel %vm204, 1, 0
    %v237 = vsel %vm205, 1, 0
    %v238 = vsel %vm206, 1, 0
    %v239 = vsel %vm207, 1, 0
    %v240 = vsel %vm208, 1, 0
    %v241 = vsel %vm209, 1, 0
    %v242 = vsel %vm210, 1, 0
    %v243 = vsel %vm211, 1, 0
    %v244 = vcvt.s32.f32 %v212
    %v245 = vcvt.s32.f32 %v213
    %v246 = vcvt.s32.f32 %v214
    %v247 = vcvt.s32.f32 %v215
    %v248 = vcvt.s32.f32 %v216
    %v249 = vcvt.s32.f32 %v217
    %v250 = vcvt.s32.f32 %v218
    %v251 = vcvt.s32.f32 %v219
    %v252 = vcvt.s32.f32 %v220
    %v253 = vcvt.s32.f32 %v221
    %v254 = vcvt.s32.f32 %v222
    %v255 = vcvt.s32.f32 %v223
    %v256 = vcvt.s32.f32 %v224
    %v257 = vcvt.s32.f32 %v225
    %v258 = vcvt.s32.f32 %v226
    %v259 = vcvt.s32.f32 %v227
    %v260 = vcvt.s32.f32 %v228
    %v261 = vcvt.s32.f32 %v229
    %v262 = vcvt.s32.f32 %v230
    %v263 = vcvt.s32.f32 %v231
    %v264 = vcvt.s32.f32 %v232
    %v265 = vcvt.s32.f32 %v233
    %v266 = vcvt.s32.f32 %v234
    %v267 = vcvt.s32.f32 %v235
    %v268 = vcvt.s32.f32 %v236
    %v269 = vcvt.s32.f32 %v237
    %v270 = vcvt.s32.f32 %v238
    %v271 = vcvt.s32.f32 %v239
    %v272 = vcvt.s32.f32 %v240
    %v273 = vcvt.s32.f32 %v241
    %v274 = vcvt.s32.f32 %v242
    %v275 = vcvt.s32.f32 %v243
    %v276 = vld [vmem:[%s2] sm:$0xff]
    %v277 = vld [vmem:[%s2 + $0x8] sm:$0xff]
    %v278 = vld [vmem:[%s2 + $0x10] sm:$0xff]
    %v279 = vld [vmem:[%s2 + $0x18] sm:$0xff]
    %v280 = vld [vmem:[%s2 + $0x20] sm:$0xff]
    %v281 = vld [vmem:[%s2 + $0x28] sm:$0xff]
    %v282 = vld [vmem:[%s2 + $0x30] sm:$0xff]
    %v283 = vld [vmem:[%s2 + $0x38] sm:$0xff]
    %v284 = vld [vmem:[%s2 + $0x40] sm:$0xff]
    %v285 = vld [vmem:[%s2 + $0x48] sm:$0xff]
    %v286 = vld [vmem:[%s2 + $0x50] sm:$0xff]
    %v287 = vld [vmem:[%s2 + $0x58] sm:$0xff]
    %v288 = vld [vmem:[%s2 + $0x60] sm:$0xff]
    %v289 = vld [vmem:[%s2 + $0x68] sm:$0xff]
    %v290 = vld [vmem:[%s2 + $0x70] sm:$0xff]
    %v291 = vld [vmem:[%s2 + $0x78] sm:$0xff]
    %v292 = vand.u32 %v291, 4294901760
    %293 = vmatpush.msra.mxu0 %v292
    %v294 = vand.u32 %v290, 4294901760
    %295 = vmatpush.msra.mxu0 %v294
    %v296 = vand.u32 %v289, 4294901760
    %297 = vmatpush.msra.mxu0 %v296
    %v298 = vand.u32 %v288, 4294901760
    %299 = vmatpush.msra.mxu0 %v298
    %v300 = vand.u32 %v287, 4294901760
    %301 = vmatpush.msra.mxu0 %v300
    %v302 = vand.u32 %v286, 4294901760
    %303 = vmatpush.msra.mxu0 %v302
    %v304 = vand.u32 %v285, 4294901760
    %305 = vmatpush.msra.mxu0 %v304
    %v306 = vand.u32 %v284, 4294901760
    %307 = vmatpush.msra.mxu0 %v306
    %v308 = vand.u32 %v283, 4294901760
    %309 = vmatpush.msra.mxu0 %v308
    %v310 = vand.u32 %v282, 4294901760
    %311 = vmatpush.msra.mxu0 %v310
    %v312 = vand.u32 %v281, 4294901760
    %313 = vmatpush.msra.mxu0 %v312
    %v314 = vand.u32 %v280, 4294901760
    %315 = vmatpush.msra.mxu0 %v314
    %v316 = vand.u32 %v279, 4294901760
    %317 = vmatpush.msra.mxu0 %v316
    %v318 = vand.u32 %v278, 4294901760
    %319 = vmatpush.msra.mxu0 %v318
    %v320 = vand.u32 %v277, 4294901760
    %321 = vmatpush.msra.mxu0 %v320
    %v322 = vand.u32 %v276, 4294901760
    %323 = vmatpush.msra.mxu0 %v322
    %v324 = vand.u32 %v244, 4294901760
    %v325 = vsub.f32 %v244, %v324
    %v326 = vand.u32 %v325, 4294901760
    %v327 = vsub.f32 %v325, %v326
    %v328 = vand.u32 %v327, 4294901760
    %329 = vmatmul.f32.gmra.mxu0 %v328
    %v330 = vpop.f32.mrf.mxu0
    %v331 = vadd.f32 0.0, %v330
    %v332 = vand.u32 %v245, 4294901760
    %v333 = vsub.f32 %v245, %v332
    %v334 = vand.u32 %v333, 4294901760
    %v335 = vsub.f32 %v333, %v334
    %v336 = vand.u32 %v335, 4294901760
    %337 = vmatmul.f32.gmra.mxu0 %v336
    %v338 = vpop.f32.mrf.mxu0
    %v339 = vadd.f32 0.0, %v338
    %v340 = vand.u32 %v246, 4294901760
    %v341 = vsub.f32 %v246, %v340
    %v342 = vand.u32 %v341, 4294901760
    %v343 = vsub.f32 %v341, %v342
    %v344 = vand.u32 %v343, 4294901760
    %345 = vmatmul.f32.gmra.mxu0 %v344
    %v346 = vpop.f32.mrf.mxu0
    %v347 = vadd.f32 0.0, %v346
    %v348 = vand.u32 %v247, 4294901760
    %v349 = vsub.f32 %v247, %v348
    %v350 = vand.u32 %v349, 4294901760
    %v351 = vsub.f32 %v349, %v350
    %v352 = vand.u32 %v351, 4294901760
    %353 = vmatmul.f32.gmra.mxu0 %v352
    %v354 = vpop.f32.mrf.mxu0
    %v355 = vadd.f32 0.0, %v354
    %v356 = vand.u32 %v248, 4294901760
    %v357 = vsub.f32 %v248, %v356
    %v358 = vand.u32 %v357, 4294901760
    %v359 = vsub.f32 %v357, %v358
    %v360 = vand.u32 %v359, 4294901760
    %361 = vmatmul.f32.gmra.mxu0 %v360
    %v362 = vpop.f32.mrf.mxu0
    %v363 = vadd.f32 0.0, %v362
    %v364 = vand.u32 %v249, 4294901760
    %v365 = vsub.f32 %v249, %v364
    %v366 = vand.u32 %v365, 4294901760
    %v367 = vsub.f32 %v365, %v366
    %v368 = vand.u32 %v367, 4294901760
    %369 = vmatmul.f32.gmra.mxu0 %v368
    %v370 = vpop.f32.mrf.mxu0
    %v371 = vadd.f32 0.0, %v370
    %v372 = vand.u32 %v250, 4294901760
    %v373 = vsub.f32 %v250, %v372
    %v374 = vand.u32 %v373, 4294901760
    %v375 = vsub.f32 %v373, %v374
    %v376 = vand.u32 %v375, 4294901760
    %377 = vmatmul.f32.gmra.mxu0 %v376
    %v378 = vpop.f32.mrf.mxu0
    %v379 = vadd.f32 0.0, %v378
    %v380 = vand.u32 %v251, 4294901760
    %v381 = vsub.f32 %v251, %v380
    %v382 = vand.u32 %v381, 4294901760
    %v383 = vsub.f32 %v381, %v382
    %v384 = vand.u32 %v383, 4294901760
    %385 = vmatmul.f32.gmra.mxu0 %v384
    %v386 = vpop.f32.mrf.mxu0
    %v387 = vadd.f32 0.0, %v386
    %v388 = vand.u32 %v252, 4294901760
    %v389 = vsub.f32 %v252, %v388
    %v390 = vand.u32 %v389, 4294901760
    %v391 = vsub.f32 %v389, %v390
    %v392 = vand.u32 %v391, 4294901760
    %393 = vmatmul.f32.gmra.mxu0 %v392
    %v394 = vpop.f32.mrf.mxu0
    %v395 = vadd.f32 0.0, %v394
    %v396 = vand.u32 %v253, 4294901760
    %v397 = vsub.f32 %v253, %v396
    %v398 = vand.u32 %v397, 4294901760
    %v399 = vsub.f32 %v397, %v398
    %v400 = vand.u32 %v399, 4294901760
    %401 = vmatmul.f32.gmra.mxu0 %v400
    %v402 = vpop.f32.mrf.mxu0
    %v403 = vadd.f32 0.0, %v402
    %v404 = vand.u32 %v254, 4294901760
    %v405 = vsub.f32 %v254, %v404
    %v406 = vand.u32 %v405, 4294901760
    %v407 = vsub.f32 %v405, %v406
    %v408 = vand.u32 %v407, 4294901760
    %409 = vmatmul.f32.gmra.mxu0 %v408
    %v410 = vpop.f32.mrf.mxu0
    %v411 = vadd.f32 0.0, %v410
    %v412 = vand.u32 %v255, 4294901760
    %v413 = vsub.f32 %v255, %v412
    %v414 = vand.u32 %v413, 4294901760
    %v415 = vsub.f32 %v413, %v414
    %v416 = vand.u32 %v415, 4294901760
    %417 = vmatmul.f32.gmra.mxu0 %v416
    %v418 = vpop.f32.mrf.mxu0
    %v419 = vadd.f32 0.0, %v418
    %v420 = vand.u32 %v256, 4294901760
    %v421 = vsub.f32 %v256, %v420
    %v422 = vand.u32 %v421, 4294901760
    %v423 = vsub.f32 %v421, %v422
    %v424 = vand.u32 %v423, 4294901760
    %425 = vmatmul.f32.gmra.mxu0 %v424
    %v426 = vpop.f32.mrf.mxu0
    %v427 = vadd.f32 0.0, %v426
    %v428 = vand.u32 %v257, 4294901760
    %v429 = vsub.f32 %v257, %v428
    %v430 = vand.u32 %v429, 4294901760
    %v431 = vsub.f32 %v429, %v430
    %v432 = vand.u32 %v431, 4294901760
    %433 = vmatmul.f32.gmra.mxu0 %v432
    %v434 = vpop.f32.mrf.mxu0
    %v435 = vadd.f32 0.0, %v434
    %v436 = vand.u32 %v258, 4294901760
    %v437 = vsub.f32 %v258, %v436
    %v438 = vand.u32 %v437, 4294901760
    %v439 = vsub.f32 %v437, %v438
    %v440 = vand.u32 %v439, 4294901760
    %441 = vmatmul.f32.gmra.mxu0 %v440
    %v442 = vpop.f32.mrf.mxu0
    %v443 = vadd.f32 0.0, %v442
    %v444 = vand.u32 %v259, 4294901760
    %v445 = vsub.f32 %v259, %v444
    %v446 = vand.u32 %v445, 4294901760
    %v447 = vsub.f32 %v445, %v446
    %v448 = vand.u32 %v447, 4294901760
    %449 = vmatmul.f32.gmra.mxu0 %v448
    %v450 = vpop.f32.mrf.mxu0
    %v451 = vadd.f32 0.0, %v450
    %v452 = vand.u32 %v260, 4294901760
    %v453 = vsub.f32 %v260, %v452
    %v454 = vand.u32 %v453, 4294901760
    %v455 = vsub.f32 %v453, %v454
    %v456 = vand.u32 %v455, 4294901760
    %457 = vmatmul.f32.gmra.mxu0 %v456
    %v458 = vpop.f32.mrf.mxu0
    %v459 = vadd.f32 0.0, %v458
    %v460 = vand.u32 %v261, 4294901760
    %v461 = vsub.f32 %v261, %v460
    %v462 = vand.u32 %v461, 4294901760
    %v463 = vsub.f32 %v461, %v462
    %v464 = vand.u32 %v463, 4294901760
    %465 = vmatmul.f32.gmra.mxu0 %v464
    %v466 = vpop.f32.mrf.mxu0
    %v467 = vadd.f32 0.0, %v466
    %v468 = vand.u32 %v262, 4294901760
    %v469 = vsub.f32 %v262, %v468
    %v470 = vand.u32 %v469, 4294901760
    %v471 = vsub.f32 %v469, %v470
    %v472 = vand.u32 %v471, 4294901760
    %473 = vmatmul.f32.gmra.mxu0 %v472
    %v474 = vpop.f32.mrf.mxu0
    %v475 = vadd.f32 0.0, %v474
    %v476 = vand.u32 %v263, 4294901760
    %v477 = vsub.f32 %v263, %v476
    %v478 = vand.u32 %v477, 4294901760
    %v479 = vsub.f32 %v477, %v478
    %v480 = vand.u32 %v479, 4294901760
    %481 = vmatmul.f32.gmra.mxu0 %v480
    %v482 = vpop.f32.mrf.mxu0
    %v483 = vadd.f32 0.0, %v482
    %v484 = vand.u32 %v264, 4294901760
    %v485 = vsub.f32 %v264, %v484
    %v486 = vand.u32 %v485, 4294901760
    %v487 = vsub.f32 %v485, %v486
    %v488 = vand.u32 %v487, 4294901760
    %489 = vmatmul.f32.gmra.mxu0 %v488
    %v490 = vpop.f32.mrf.mxu0
    %v491 = vadd.f32 0.0, %v490
    %v492 = vand.u32 %v265, 4294901760
    %v493 = vsub.f32 %v265, %v492
    %v494 = vand.u32 %v493, 4294901760
    %v495 = vsub.f32 %v493, %v494
    %v496 = vand.u32 %v495, 4294901760
    %497 = vmatmul.f32.gmra.mxu0 %v496
    %v498 = vpop.f32.mrf.mxu0
    %v499 = vadd.f32 0.0, %v498
    %v500 = vand.u32 %v266, 4294901760
    %v501 = vsub.f32 %v266, %v500
    %v502 = vand.u32 %v501, 4294901760
    %v503 = vsub.f32 %v501, %v502
    %v504 = vand.u32 %v503, 4294901760
    %505 = vmatmul.f32.gmra.mxu0 %v504
    %v506 = vpop.f32.mrf.mxu0
    %v507 = vadd.f32 0.0, %v506
    %v508 = vand.u32 %v267, 4294901760
    %v509 = vsub.f32 %v267, %v508
    %v510 = vand.u32 %v509, 4294901760
    %v511 = vsub.f32 %v509, %v510
    %v512 = vand.u32 %v511, 4294901760
    %513 = vmatmul.f32.gmra.mxu0 %v512
    %v514 = vpop.f32.mrf.mxu0
    %v515 = vadd.f32 0.0, %v514
    %v516 = vand.u32 %v268, 4294901760
    %v517 = vsub.f32 %v268, %v516
    %v518 = vand.u32 %v517, 4294901760
    %v519 = vsub.f32 %v517, %v518
    %v520 = vand.u32 %v519, 4294901760
    %521 = vmatmul.f32.gmra.mxu0 %v520
    %v522 = vpop.f32.mrf.mxu0
    %v523 = vadd.f32 0.0, %v522
    %v524 = vand.u32 %v269, 4294901760
    %v525 = vsub.f32 %v269, %v524
    %v526 = vand.u32 %v525, 4294901760
    %v527 = vsub.f32 %v525, %v526
    %v528 = vand.u32 %v527, 4294901760
    %529 = vmatmul.f32.gmra.mxu0 %v528
    %v530 = vpop.f32.mrf.mxu0
    %v531 = vadd.f32 0.0, %v530
    %v532 = vand.u32 %v270, 4294901760
    %v533 = vsub.f32 %v270, %v532
    %v534 = vand.u32 %v533, 4294901760
    %v535 = vsub.f32 %v533, %v534
    %v536 = vand.u32 %v535, 4294901760
    %537 = vmatmul.f32.gmra.mxu0 %v536
    %v538 = vpop.f32.mrf.mxu0
    %v539 = vadd.f32 0.0, %v538
    %v540 = vand.u32 %v271, 4294901760
    %v541 = vsub.f32 %v271, %v540
    %v542 = vand.u32 %v541, 4294901760
    %v543 = vsub.f32 %v541, %v542
    %v544 = vand.u32 %v543, 4294901760
    %545 = vmatmul.f32.gmra.mxu0 %v544
    %v546 = vpop.f32.mrf.mxu0
    %v547 = vadd.f32 0.0, %v546
    %v548 = vand.u32 %v272, 4294901760
    %v549 = vsub.f32 %v272, %v548
    %v550 = vand.u32 %v549, 4294901760
    %v551 = vsub.f32 %v549, %v550
    %v552 = vand.u32 %v551, 4294901760
    %553 = vmatmul.f32.gmra.mxu0 %v552
    %v554 = vpop.f32.mrf.mxu0
    %v555 = vadd.f32 0.0, %v554
    %v556 = vand.u32 %v273, 4294901760
    %v557 = vsub.f32 %v273, %v556
    %v558 = vand.u32 %v557, 4294901760
    %v559 = vsub.f32 %v557, %v558
    %v560 = vand.u32 %v559, 4294901760
    %561 = vmatmul.f32.gmra.mxu0 %v560
    %v562 = vpop.f32.mrf.mxu0
    %v563 = vadd.f32 0.0, %v562
    %v564 = vand.u32 %v274, 4294901760
    %v565 = vsub.f32 %v274, %v564
    %v566 = vand.u32 %v565, 4294901760
    %v567 = vsub.f32 %v565, %v566
    %v568 = vand.u32 %v567, 4294901760
    %569 = vmatmul.f32.gmra.mxu0 %v568
    %v570 = vpop.f32.mrf.mxu0
    %v571 = vadd.f32 0.0, %v570
    %v572 = vand.u32 %v275, 4294901760
    %v573 = vsub.f32 %v275, %v572
    %v574 = vand.u32 %v573, 4294901760
    %v575 = vsub.f32 %v573, %v574
    %v576 = vand.u32 %v575, 4294901760
    %577 = vmatmul.f32.gmra.mxu0 %v576
    %v578 = vpop.f32.mrf.mxu0
    %v579 = vadd.f32 0.0, %v578
    %580 = vdwg.mxu0
    %v581 = vand.u32 %v291, 4294901760
    %v582 = vsub.f32 %v291, %v581
    %v583 = vand.u32 %v582, 4294901760
    %v584 = vsub.f32 %v582, %v583
    %v585 = vand.u32 %v584, 4294901760
    %586 = vmatpush.msra.mxu0 %v585
    %v587 = vand.u32 %v290, 4294901760
    %v588 = vsub.f32 %v290, %v587
    %v589 = vand.u32 %v588, 4294901760
    %v590 = vsub.f32 %v588, %v589
    %v591 = vand.u32 %v590, 4294901760
    %592 = vmatpush.msra.mxu0 %v591
    %v593 = vand.u32 %v289, 4294901760
    %v594 = vsub.f32 %v289, %v593
    %v595 = vand.u32 %v594, 4294901760
    %v596 = vsub.f32 %v594, %v595
    %v597 = vand.u32 %v596, 4294901760
    %598 = vmatpush.msra.mxu0 %v597
    %v599 = vand.u32 %v288, 4294901760
    %v600 = vsub.f32 %v288, %v599
    %v601 = vand.u32 %v600, 4294901760
    %v602 = vsub.f32 %v600, %v601
    %v603 = vand.u32 %v602, 4294901760
    %604 = vmatpush.msra.mxu0 %v603
    %v605 = vand.u32 %v287, 4294901760
    %v606 = vsub.f32 %v287, %v605
    %v607 = vand.u32 %v606, 4294901760
    %v608 = vsub.f32 %v606, %v607
    %v609 = vand.u32 %v608, 4294901760
    %610 = vmatpush.msra.mxu0 %v609
    %v611 = vand.u32 %v286, 4294901760
    %v612 = vsub.f32 %v286, %v611
    %v613 = vand.u32 %v612, 4294901760
    %v614 = vsub.f32 %v612, %v613
    %v615 = vand.u32 %v614, 4294901760
    %616 = vmatpush.msra.mxu0 %v615
    %v617 = vand.u32 %v285, 4294901760
    %v618 = vsub.f32 %v285, %v617
    %v619 = vand.u32 %v618, 4294901760
    %v620 = vsub.f32 %v618, %v619
    %v621 = vand.u32 %v620, 4294901760
    %622 = vmatpush.msra.mxu0 %v621
    %v623 = vand.u32 %v284, 4294901760
    %v624 = vsub.f32 %v284, %v623
    %v625 = vand.u32 %v624, 4294901760
    %v626 = vsub.f32 %v624, %v625
    %v627 = vand.u32 %v626, 4294901760
    %628 = vmatpush.msra.mxu0 %v627
    %v629 = vand.u32 %v283, 4294901760
    %v630 = vsub.f32 %v283, %v629
    %v631 = vand.u32 %v630, 4294901760
    %v632 = vsub.f32 %v630, %v631
    %v633 = vand.u32 %v632, 4294901760
    %634 = vmatpush.msra.mxu0 %v633
    %v635 = vand.u32 %v282, 4294901760
    %v636 = vsub.f32 %v282, %v635
    %v637 = vand.u32 %v636, 4294901760
    %v638 = vsub.f32 %v636, %v637
    %v639 = vand.u32 %v638, 4294901760
    %640 = vmatpush.msra.mxu0 %v639
    %v641 = vand.u32 %v281, 4294901760
    %v642 = vsub.f32 %v281, %v641
    %v643 = vand.u32 %v642, 4294901760
    %v644 = vsub.f32 %v642, %v643
    %v645 = vand.u32 %v644, 4294901760
    %646 = vmatpush.msra.mxu0 %v645
    %v647 = vand.u32 %v280, 4294901760
    %v648 = vsub.f32 %v280, %v647
    %v649 = vand.u32 %v648, 4294901760
    %v650 = vsub.f32 %v648, %v649
    %v651 = vand.u32 %v650, 4294901760
    %652 = vmatpush.msra.mxu0 %v651
    %v653 = vand.u32 %v279, 4294901760
    %v654 = vsub.f32 %v279, %v653
    %v655 = vand.u32 %v654, 4294901760
    %v656 = vsub.f32 %v654, %v655
    %v657 = vand.u32 %v656, 4294901760
    %658 = vmatpush.msra.mxu0 %v657
    %v659 = vand.u32 %v278, 4294901760
    %v660 = vsub.f32 %v278, %v659
    %v661 = vand.u32 %v660, 4294901760
    %v662 = vsub.f32 %v660, %v661
    %v663 = vand.u32 %v662, 4294901760
    %664 = vmatpush.msra.mxu0 %v663
    %v665 = vand.u32 %v277, 4294901760
    %v666 = vsub.f32 %v277, %v665
    %v667 = vand.u32 %v666, 4294901760
    %v668 = vsub.f32 %v666, %v667
    %v669 = vand.u32 %v668, 4294901760
    %670 = vmatpush.msra.mxu0 %v669
    %v671 = vand.u32 %v276, 4294901760
    %v672 = vsub.f32 %v276, %v671
    %v673 = vand.u32 %v672, 4294901760
    %v674 = vsub.f32 %v672, %v673
    %v675 = vand.u32 %v674, 4294901760
    %676 = vmatpush.msra.mxu0 %v675
    %v677 = vand.u32 %v244, 4294901760
    %678 = vmatmul.f32.gmra.mxu0 %v677
    %v679 = vpop.f32.mrf.mxu0
    %v680 = vadd.f32 %v331, %v679
    %v681 = vand.u32 %v245, 4294901760
    %682 = vmatmul.f32.gmra.mxu0 %v681
    %v683 = vpop.f32.mrf.mxu0
    %v684 = vadd.f32 %v339, %v683
    %v685 = vand.u32 %v246, 4294901760
    %686 = vmatmul.f32.gmra.mxu0 %v685
    %v687 = vpop.f32.mrf.mxu0
    %v688 = vadd.f32 %v347, %v687
    %v689 = vand.u32 %v247, 4294901760
    %690 = vmatmul.f32.gmra.mxu0 %v689
    %v691 = vpop.f32.mrf.mxu0
    %v692 = vadd.f32 %v355, %v691
    %v693 = vand.u32 %v248, 4294901760
    %694 = vmatmul.f32.gmra.mxu0 %v693
    %v695 = vpop.f32.mrf.mxu0
    %v696 = vadd.f32 %v363, %v695
    %v697 = vand.u32 %v249, 4294901760
    %698 = vmatmul.f32.gmra.mxu0 %v697
    %v699 = vpop.f32.mrf.mxu0
    %v700 = vadd.f32 %v371, %v699
    %v701 = vand.u32 %v250, 4294901760
    %702 = vmatmul.f32.gmra.mxu0 %v701
    %v703 = vpop.f32.mrf.mxu0
    %v704 = vadd.f32 %v379, %v703
    %v705 = vand.u32 %v251, 4294901760
    %706 = vmatmul.f32.gmra.mxu0 %v705
    %v707 = vpop.f32.mrf.mxu0
    %v708 = vadd.f32 %v387, %v707
    %v709 = vand.u32 %v252, 4294901760
    %710 = vmatmul.f32.gmra.mxu0 %v709
    %v711 = vpop.f32.mrf.mxu0
    %v712 = vadd.f32 %v395, %v711
    %v713 = vand.u32 %v253, 4294901760
    %714 = vmatmul.f32.gmra.mxu0 %v713
    %v715 = vpop.f32.mrf.mxu0
    %v716 = vadd.f32 %v403, %v715
    %v717 = vand.u32 %v254, 4294901760
    %718 = vmatmul.f32.gmra.mxu0 %v717
    %v719 = vpop.f32.mrf.mxu0
    %v720 = vadd.f32 %v411, %v719
    %v721 = vand.u32 %v255, 4294901760
    %722 = vmatmul.f32.gmra.mxu0 %v721
    %v723 = vpop.f32.mrf.mxu0
    %v724 = vadd.f32 %v419, %v723
    %v725 = vand.u32 %v256, 4294901760
    %726 = vmatmul.f32.gmra.mxu0 %v725
    %v727 = vpop.f32.mrf.mxu0
    %v728 = vadd.f32 %v427, %v727
    %v729 = vand.u32 %v257, 4294901760
    %730 = vmatmul.f32.gmra.mxu0 %v729
    %v731 = vpop.f32.mrf.mxu0
    %v732 = vadd.f32 %v435, %v731
    %v733 = vand.u32 %v258, 4294901760
    %734 = vmatmul.f32.gmra.mxu0 %v733
    %v735 = vpop.f32.mrf.mxu0
    %v736 = vadd.f32 %v443, %v735
    %v737 = vand.u32 %v259, 4294901760
    %738 = vmatmul.f32.gmra.mxu0 %v737
    %v739 = vpop.f32.mrf.mxu0
    %v740 = vadd.f32 %v451, %v739
    %v741 = vand.u32 %v260, 4294901760
    %742 = vmatmul.f32.gmra.mxu0 %v741
    %v743 = vpop.f32.mrf.mxu0
    %v744 = vadd.f32 %v459, %v743
    %v745 = vand.u32 %v261, 4294901760
    %746 = vmatmul.f32.gmra.mxu0 %v745
    %v747 = vpop.f32.mrf.mxu0
    %v748 = vadd.f32 %v467, %v747
    %v749 = vand.u32 %v262, 4294901760
    %750 = vmatmul.f32.gmra.mxu0 %v749
    %v751 = vpop.f32.mrf.mxu0
    %v752 = vadd.f32 %v475, %v751
    %v753 = vand.u32 %v263, 4294901760
    %754 = vmatmul.f32.gmra.mxu0 %v753
    %v755 = vpop.f32.mrf.mxu0
    %v756 = vadd.f32 %v483, %v755
    %v757 = vand.u32 %v264, 4294901760
    %758 = vmatmul.f32.gmra.mxu0 %v757
    %v759 = vpop.f32.mrf.mxu0
    %v760 = vadd.f32 %v491, %v759
    %v761 = vand.u32 %v265, 4294901760
    %762 = vmatmul.f32.gmra.mxu0 %v761
    %v763 = vpop.f32.mrf.mxu0
    %v764 = vadd.f32 %v499, %v763
    %v765 = vand.u32 %v266, 4294901760
    %766 = vmatmul.f32.gmra.mxu0 %v765
    %v767 = vpop.f32.mrf.mxu0
    %v768 = vadd.f32 %v507, %v767
    %v769 = vand.u32 %v267, 4294901760
    %770 = vmatmul.f32.gmra.mxu0 %v769
    %v771 = vpop.f32.mrf.mxu0
    %v772 = vadd.f32 %v515, %v771
    %v773 = vand.u32 %v268, 4294901760
    %774 = vmatmul.f32.gmra.mxu0 %v773
    %v775 = vpop.f32.mrf.mxu0
    %v776 = vadd.f32 %v523, %v775
    %v777 = vand.u32 %v269, 4294901760
    %778 = vmatmul.f32.gmra.mxu0 %v777
    %v779 = vpop.f32.mrf.mxu0
    %v780 = vadd.f32 %v531, %v779
    %v781 = vand.u32 %v270, 4294901760
    %782 = vmatmul.f32.gmra.mxu0 %v781
    %v783 = vpop.f32.mrf.mxu0
    %v784 = vadd.f32 %v539, %v783
    %v785 = vand.u32 %v271, 4294901760
    %786 = vmatmul.f32.gmra.mxu0 %v785
    %v787 = vpop.f32.mrf.mxu0
    %v788 = vadd.f32 %v547, %v787
    %v789 = vand.u32 %v272, 4294901760
    %790 = vmatmul.f32.gmra.mxu0 %v789
    %v791 = vpop.f32.mrf.mxu0
    %v792 = vadd.f32 %v555, %v791
    %v793 = vand.u32 %v273, 4294901760
    %794 = vmatmul.f32.gmra.mxu0 %v793
    %v795 = vpop.f32.mrf.mxu0
    %v796 = vadd.f32 %v563, %v795
    %v797 = vand.u32 %v274, 4294901760
    %798 = vmatmul.f32.gmra.mxu0 %v797
    %v799 = vpop.f32.mrf.mxu0
    %v800 = vadd.f32 %v571, %v799
    %v801 = vand.u32 %v275, 4294901760
    %802 = vmatmul.f32.gmra.mxu0 %v801
    %v803 = vpop.f32.mrf.mxu0
    %v804 = vadd.f32 %v579, %v803
    %805 = vdwg.mxu0
    %v806 = vand.u32 %v291, 4294901760
    %v807 = vsub.f32 %v291, %v806
    %808 = vmatpush.msra.mxu0 %v807
    %v809 = vand.u32 %v290, 4294901760
    %v810 = vsub.f32 %v290, %v809
    %811 = vmatpush.msra.mxu0 %v810
    %v812 = vand.u32 %v289, 4294901760
    %v813 = vsub.f32 %v289, %v812
    %814 = vmatpush.msra.mxu0 %v813
    %v815 = vand.u32 %v288, 4294901760
    %v816 = vsub.f32 %v288, %v815
    %817 = vmatpush.msra.mxu0 %v816
    %v818 = vand.u32 %v287, 4294901760
    %v819 = vsub.f32 %v287, %v818
    %820 = vmatpush.msra.mxu0 %v819
    %v821 = vand.u32 %v286, 4294901760
    %v822 = vsub.f32 %v286, %v821
    %823 = vmatpush.msra.mxu0 %v822
    %v824 = vand.u32 %v285, 4294901760
    %v825 = vsub.f32 %v285, %v824
    %826 = vmatpush.msra.mxu0 %v825
    %v827 = vand.u32 %v284, 4294901760
    %v828 = vsub.f32 %v284, %v827
    %829 = vmatpush.msra.mxu0 %v828
    %v830 = vand.u32 %v283, 4294901760
    %v831 = vsub.f32 %v283, %v830
    %832 = vmatpush.msra.mxu0 %v831
    %v833 = vand.u32 %v282, 4294901760
    %v834 = vsub.f32 %v282, %v833
    %835 = vmatpush.msra.mxu0 %v834
    %v836 = vand.u32 %v281, 4294901760
    %v837 = vsub.f32 %v281, %v836
    %838 = vmatpush.msra.mxu0 %v837
    %v839 = vand.u32 %v280, 4294901760
    %v840 = vsub.f32 %v280, %v839
    %841 = vmatpush.msra.mxu0 %v840
    %v842 = vand.u32 %v279, 4294901760
    %v843 = vsub.f32 %v279, %v842
    %844 = vmatpush.msra.mxu0 %v843
    %v845 = vand.u32 %v278, 4294901760
    %v846 = vsub.f32 %v278, %v845
    %847 = vmatpush.msra.mxu0 %v846
    %v848 = vand.u32 %v277, 4294901760
    %v849 = vsub.f32 %v277, %v848
    %850 = vmatpush.msra.mxu0 %v849
    %v851 = vand.u32 %v276, 4294901760
    %v852 = vsub.f32 %v276, %v851
    %853 = vmatpush.msra.mxu0 %v852
    %v854 = vand.u32 %v244, 4294901760
    %v855 = vsub.f32 %v244, %v854
    %856 = vmatmul.f32.gmra.mxu0 %v855
    %v857 = vpop.f32.mrf.mxu0
    %v858 = vadd.f32 %v680, %v857
    %v859 = vand.u32 %v245, 4294901760
    %v860 = vsub.f32 %v245, %v859
    %861 = vmatmul.f32.gmra.mxu0 %v860
    %v862 = vpop.f32.mrf.mxu0
    %v863 = vadd.f32 %v684, %v862
    %v864 = vand.u32 %v246, 4294901760
    %v865 = vsub.f32 %v246, %v864
    %866 = vmatmul.f32.gmra.mxu0 %v865
    %v867 = vpop.f32.mrf.mxu0
    %v868 = vadd.f32 %v688, %v867
    %v869 = vand.u32 %v247, 4294901760
    %v870 = vsub.f32 %v247, %v869
    %871 = vmatmul.f32.gmra.mxu0 %v870
    %v872 = vpop.f32.mrf.mxu0
    %v873 = vadd.f32 %v692, %v872
    %v874 = vand.u32 %v248, 4294901760
    %v875 = vsub.f32 %v248, %v874
    %876 = vmatmul.f32.gmra.mxu0 %v875
    %v877 = vpop.f32.mrf.mxu0
    %v878 = vadd.f32 %v696, %v877
    %v879 = vand.u32 %v249, 4294901760
    %v880 = vsub.f32 %v249, %v879
    %881 = vmatmul.f32.gmra.mxu0 %v880
    %v882 = vpop.f32.mrf.mxu0
    %v883 = vadd.f32 %v700, %v882
    %v884 = vand.u32 %v250, 4294901760
    %v885 = vsub.f32 %v250, %v884
    %886 = vmatmul.f32.gmra.mxu0 %v885
    %v887 = vpop.f32.mrf.mxu0
    %v888 = vadd.f32 %v704, %v887
    %v889 = vand.u32 %v251, 4294901760
    %v890 = vsub.f32 %v251, %v889
    %891 = vmatmul.f32.gmra.mxu0 %v890
    %v892 = vpop.f32.mrf.mxu0
    %v893 = vadd.f32 %v708, %v892
    %v894 = vand.u32 %v252, 4294901760
    %v895 = vsub.f32 %v252, %v894
    %896 = vmatmul.f32.gmra.mxu0 %v895
    %v897 = vpop.f32.mrf.mxu0
    %v898 = vadd.f32 %v712, %v897
    %v899 = vand.u32 %v253, 4294901760
    %v900 = vsub.f32 %v253, %v899
    %901 = vmatmul.f32.gmra.mxu0 %v900
    %v902 = vpop.f32.mrf.mxu0
    %v903 = vadd.f32 %v716, %v902
    %v904 = vand.u32 %v254, 4294901760
    %v905 = vsub.f32 %v254, %v904
    %906 = vmatmul.f32.gmra.mxu0 %v905
    %v907 = vpop.f32.mrf.mxu0
    %v908 = vadd.f32 %v720, %v907
    %v909 = vand.u32 %v255, 4294901760
    %v910 = vsub.f32 %v255, %v909
    %911 = vmatmul.f32.gmra.mxu0 %v910
    %v912 = vpop.f32.mrf.mxu0
    %v913 = vadd.f32 %v724, %v912
    %v914 = vand.u32 %v256, 4294901760
    %v915 = vsub.f32 %v256, %v914
    %916 = vmatmul.f32.gmra.mxu0 %v915
    %v917 = vpop.f32.mrf.mxu0
    %v918 = vadd.f32 %v728, %v917
    %v919 = vand.u32 %v257, 4294901760
    %v920 = vsub.f32 %v257, %v919
    %921 = vmatmul.f32.gmra.mxu0 %v920
    %v922 = vpop.f32.mrf.mxu0
    %v923 = vadd.f32 %v732, %v922
    %v924 = vand.u32 %v258, 4294901760
    %v925 = vsub.f32 %v258, %v924
    %926 = vmatmul.f32.gmra.mxu0 %v925
    %v927 = vpop.f32.mrf.mxu0
    %v928 = vadd.f32 %v736, %v927
    %v929 = vand.u32 %v259, 4294901760
    %v930 = vsub.f32 %v259, %v929
    %931 = vmatmul.f32.gmra.mxu0 %v930
    %v932 = vpop.f32.mrf.mxu0
    %v933 = vadd.f32 %v740, %v932
    %v934 = vand.u32 %v260, 4294901760
    %v935 = vsub.f32 %v260, %v934
    %936 = vmatmul.f32.gmra.mxu0 %v935
    %v937 = vpop.f32.mrf.mxu0
    %v938 = vadd.f32 %v744, %v937
    %v939 = vand.u32 %v261, 4294901760
    %v940 = vsub.f32 %v261, %v939
    %941 = vmatmul.f32.gmra.mxu0 %v940
    %v942 = vpop.f32.mrf.mxu0
    %v943 = vadd.f32 %v748, %v942
    %v944 = vand.u32 %v262, 4294901760
    %v945 = vsub.f32 %v262, %v944
    %946 = vmatmul.f32.gmra.mxu0 %v945
    %v947 = vpop.f32.mrf.mxu0
    %v948 = vadd.f32 %v752, %v947
    %v949 = vand.u32 %v263, 4294901760
    %v950 = vsub.f32 %v263, %v949
    %951 = vmatmul.f32.gmra.mxu0 %v950
    %v952 = vpop.f32.mrf.mxu0
    %v953 = vadd.f32 %v756, %v952
    %v954 = vand.u32 %v264, 4294901760
    %v955 = vsub.f32 %v264, %v954
    %956 = vmatmul.f32.gmra.mxu0 %v955
    %v957 = vpop.f32.mrf.mxu0
    %v958 = vadd.f32 %v760, %v957
    %v959 = vand.u32 %v265, 4294901760
    %v960 = vsub.f32 %v265, %v959
    %961 = vmatmul.f32.gmra.mxu0 %v960
    %v962 = vpop.f32.mrf.mxu0
    %v963 = vadd.f32 %v764, %v962
    %v964 = vand.u32 %v266, 4294901760
    %v965 = vsub.f32 %v266, %v964
    %966 = vmatmul.f32.gmra.mxu0 %v965
    %v967 = vpop.f32.mrf.mxu0
    %v968 = vadd.f32 %v768, %v967
    %v969 = vand.u32 %v267, 4294901760
    %v970 = vsub.f32 %v267, %v969
    %971 = vmatmul.f32.gmra.mxu0 %v970
    %v972 = vpop.f32.mrf.mxu0
    %v973 = vadd.f32 %v772, %v972
    %v974 = vand.u32 %v268, 4294901760
    %v975 = vsub.f32 %v268, %v974
    %976 = vmatmul.f32.gmra.mxu0 %v975
    %v977 = vpop.f32.mrf.mxu0
    %v978 = vadd.f32 %v776, %v977
    %v979 = vand.u32 %v269, 4294901760
    %v980 = vsub.f32 %v269, %v979
    %981 = vmatmul.f32.gmra.mxu0 %v980
    %v982 = vpop.f32.mrf.mxu0
    %v983 = vadd.f32 %v780, %v982
    %v984 = vand.u32 %v270, 4294901760
    %v985 = vsub.f32 %v270, %v984
    %986 = vmatmul.f32.gmra.mxu0 %v985
    %v987 = vpop.f32.mrf.mxu0
    %v988 = vadd.f32 %v784, %v987
    %v989 = vand.u32 %v271, 4294901760
    %v990 = vsub.f32 %v271, %v989
    %991 = vmatmul.f32.gmra.mxu0 %v990
    %v992 = vpop.f32.mrf.mxu0
    %v993 = vadd.f32 %v788, %v992
    %v994 = vand.u32 %v272, 4294901760
    %v995 = vsub.f32 %v272, %v994
    %996 = vmatmul.f32.gmra.mxu0 %v995
    %v997 = vpop.f32.mrf.mxu0
    %v998 = vadd.f32 %v792, %v997
    %v999 = vand.u32 %v273, 4294901760
    %v1000 = vsub.f32 %v273, %v999
    %1001 = vmatmul.f32.gmra.mxu0 %v1000
    %v1002 = vpop.f32.mrf.mxu0
    %v1003 = vadd.f32 %v796, %v1002
    %v1004 = vand.u32 %v274, 4294901760
    %v1005 = vsub.f32 %v274, %v1004
    %1006 = vmatmul.f32.gmra.mxu0 %v1005
    %v1007 = vpop.f32.mrf.mxu0
    %v1008 = vadd.f32 %v800, %v1007
    %v1009 = vand.u32 %v275, 4294901760
    %v1010 = vsub.f32 %v275, %v1009
    %1011 = vmatmul.f32.gmra.mxu0 %v1010
    %v1012 = vpop.f32.mrf.mxu0
    %v1013 = vadd.f32 %v804, %v1012
    %1014 = vdwg.mxu0
    %v1015 = vand.u32 %v291, 4294901760
    %1016 = vmatpush.msra.mxu0 %v1015
    %v1017 = vand.u32 %v290, 4294901760
    %1018 = vmatpush.msra.mxu0 %v1017
    %v1019 = vand.u32 %v289, 4294901760
    %1020 = vmatpush.msra.mxu0 %v1019
    %v1021 = vand.u32 %v288, 4294901760
    %1022 = vmatpush.msra.mxu0 %v1021
    %v1023 = vand.u32 %v287, 4294901760
    %1024 = vmatpush.msra.mxu0 %v1023
    %v1025 = vand.u32 %v286, 4294901760
    %1026 = vmatpush.msra.mxu0 %v1025
    %v1027 = vand.u32 %v285, 4294901760
    %1028 = vmatpush.msra.mxu0 %v1027
    %v1029 = vand.u32 %v284, 4294901760
    %1030 = vmatpush.msra.mxu0 %v1029
    %v1031 = vand.u32 %v283, 4294901760
    %1032 = vmatpush.msra.mxu0 %v1031
    %v1033 = vand.u32 %v282, 4294901760
    %1034 = vmatpush.msra.mxu0 %v1033
    %v1035 = vand.u32 %v281, 4294901760
    %1036 = vmatpush.msra.mxu0 %v1035
    %v1037 = vand.u32 %v280, 4294901760
    %1038 = vmatpush.msra.mxu0 %v1037
    %v1039 = vand.u32 %v279, 4294901760
    %1040 = vmatpush.msra.mxu0 %v1039
    %v1041 = vand.u32 %v278, 4294901760
    %1042 = vmatpush.msra.mxu0 %v1041
    %v1043 = vand.u32 %v277, 4294901760
    %1044 = vmatpush.msra.mxu0 %v1043
    %v1045 = vand.u32 %v276, 4294901760
    %1046 = vmatpush.msra.mxu0 %v1045
    %v1047 = vand.u32 %v244, 4294901760
    %v1048 = vsub.f32 %v244, %v1047
    %v1049 = vand.u32 %v1048, 4294901760
    %1050 = vmatmul.f32.gmra.mxu0 %v1049
    %v1051 = vpop.f32.mrf.mxu0
    %v1052 = vadd.f32 %v858, %v1051
    %v1053 = vand.u32 %v245, 4294901760
    %v1054 = vsub.f32 %v245, %v1053
    %v1055 = vand.u32 %v1054, 4294901760
    %1056 = vmatmul.f32.gmra.mxu0 %v1055
    %v1057 = vpop.f32.mrf.mxu0
    %v1058 = vadd.f32 %v863, %v1057
    %v1059 = vand.u32 %v246, 4294901760
    %v1060 = vsub.f32 %v246, %v1059
    %v1061 = vand.u32 %v1060, 4294901760
    %1062 = vmatmul.f32.gmra.mxu0 %v1061
    %v1063 = vpop.f32.mrf.mxu0
    %v1064 = vadd.f32 %v868, %v1063
    %v1065 = vand.u32 %v247, 4294901760
    %v1066 = vsub.f32 %v247, %v1065
    %v1067 = vand.u32 %v1066, 4294901760
    %1068 = vmatmul.f32.gmra.mxu0 %v1067
    %v1069 = vpop.f32.mrf.mxu0
    %v1070 = vadd.f32 %v873, %v1069
    %v1071 = vand.u32 %v248, 4294901760
    %v1072 = vsub.f32 %v248, %v1071
    %v1073 = vand.u32 %v1072, 4294901760
    %1074 = vmatmul.f32.gmra.mxu0 %v1073
    %v1075 = vpop.f32.mrf.mxu0
    %v1076 = vadd.f32 %v878, %v1075
    %v1077 = vand.u32 %v249, 4294901760
    %v1078 = vsub.f32 %v249, %v1077
    %v1079 = vand.u32 %v1078, 4294901760
    %1080 = vmatmul.f32.gmra.mxu0 %v1079
    %v1081 = vpop.f32.mrf.mxu0
    %v1082 = vadd.f32 %v883, %v1081
    %v1083 = vand.u32 %v250, 4294901760
    %v1084 = vsub.f32 %v250, %v1083
    %v1085 = vand.u32 %v1084, 4294901760
    %1086 = vmatmul.f32.gmra.mxu0 %v1085
    %v1087 = vpop.f32.mrf.mxu0
    %v1088 = vadd.f32 %v888, %v1087
    %v1089 = vand.u32 %v251, 4294901760
    %v1090 = vsub.f32 %v251, %v1089
    %v1091 = vand.u32 %v1090, 4294901760
    %1092 = vmatmul.f32.gmra.mxu0 %v1091
    %v1093 = vpop.f32.mrf.mxu0
    %v1094 = vadd.f32 %v893, %v1093
    %v1095 = vand.u32 %v252, 4294901760
    %v1096 = vsub.f32 %v252, %v1095
    %v1097 = vand.u32 %v1096, 4294901760
    %1098 = vmatmul.f32.gmra.mxu0 %v1097
    %v1099 = vpop.f32.mrf.mxu0
    %v1100 = vadd.f32 %v898, %v1099
    %v1101 = vand.u32 %v253, 4294901760
    %v1102 = vsub.f32 %v253, %v1101
    %v1103 = vand.u32 %v1102, 4294901760
    %1104 = vmatmul.f32.gmra.mxu0 %v1103
    %v1105 = vpop.f32.mrf.mxu0
    %v1106 = vadd.f32 %v903, %v1105
    %v1107 = vand.u32 %v254, 4294901760
    %v1108 = vsub.f32 %v254, %v1107
    %v1109 = vand.u32 %v1108, 4294901760
    %1110 = vmatmul.f32.gmra.mxu0 %v1109
    %v1111 = vpop.f32.mrf.mxu0
    %v1112 = vadd.f32 %v908, %v1111
    %v1113 = vand.u32 %v255, 4294901760
    %v1114 = vsub.f32 %v255, %v1113
    %v1115 = vand.u32 %v1114, 4294901760
    %1116 = vmatmul.f32.gmra.mxu0 %v1115
    %v1117 = vpop.f32.mrf.mxu0
    %v1118 = vadd.f32 %v913, %v1117
    %v1119 = vand.u32 %v256, 4294901760
    %v1120 = vsub.f32 %v256, %v1119
    %v1121 = vand.u32 %v1120, 4294901760
    %1122 = vmatmul.f32.gmra.mxu0 %v1121
    %v1123 = vpop.f32.mrf.mxu0
    %v1124 = vadd.f32 %v918, %v1123
    %v1125 = vand.u32 %v257, 4294901760
    %v1126 = vsub.f32 %v257, %v1125
    %v1127 = vand.u32 %v1126, 4294901760
    %1128 = vmatmul.f32.gmra.mxu0 %v1127
    %v1129 = vpop.f32.mrf.mxu0
    %v1130 = vadd.f32 %v923, %v1129
    %v1131 = vand.u32 %v258, 4294901760
    %v1132 = vsub.f32 %v258, %v1131
    %v1133 = vand.u32 %v1132, 4294901760
    %1134 = vmatmul.f32.gmra.mxu0 %v1133
    %v1135 = vpop.f32.mrf.mxu0
    %v1136 = vadd.f32 %v928, %v1135
    %v1137 = vand.u32 %v259, 4294901760
    %v1138 = vsub.f32 %v259, %v1137
    %v1139 = vand.u32 %v1138, 4294901760
    %1140 = vmatmul.f32.gmra.mxu0 %v1139
    %v1141 = vpop.f32.mrf.mxu0
    %v1142 = vadd.f32 %v933, %v1141
    %v1143 = vand.u32 %v260, 4294901760
    %v1144 = vsub.f32 %v260, %v1143
    %v1145 = vand.u32 %v1144, 4294901760
    %1146 = vmatmul.f32.gmra.mxu0 %v1145
    %v1147 = vpop.f32.mrf.mxu0
    %v1148 = vadd.f32 %v938, %v1147
    %v1149 = vand.u32 %v261, 4294901760
    %v1150 = vsub.f32 %v261, %v1149
    %v1151 = vand.u32 %v1150, 4294901760
    %1152 = vmatmul.f32.gmra.mxu0 %v1151
    %v1153 = vpop.f32.mrf.mxu0
    %v1154 = vadd.f32 %v943, %v1153
    %v1155 = vand.u32 %v262, 4294901760
    %v1156 = vsub.f32 %v262, %v1155
    %v1157 = vand.u32 %v1156, 4294901760
    %1158 = vmatmul.f32.gmra.mxu0 %v1157
    %v1159 = vpop.f32.mrf.mxu0
    %v1160 = vadd.f32 %v948, %v1159
    %v1161 = vand.u32 %v263, 4294901760
    %v1162 = vsub.f32 %v263, %v1161
    %v1163 = vand.u32 %v1162, 4294901760
    %1164 = vmatmul.f32.gmra.mxu0 %v1163
    %v1165 = vpop.f32.mrf.mxu0
    %v1166 = vadd.f32 %v953, %v1165
    %v1167 = vand.u32 %v264, 4294901760
    %v1168 = vsub.f32 %v264, %v1167
    %v1169 = vand.u32 %v1168, 4294901760
    %1170 = vmatmul.f32.gmra.mxu0 %v1169
    %v1171 = vpop.f32.mrf.mxu0
    %v1172 = vadd.f32 %v958, %v1171
    %v1173 = vand.u32 %v265, 4294901760
    %v1174 = vsub.f32 %v265, %v1173
    %v1175 = vand.u32 %v1174, 4294901760
    %1176 = vmatmul.f32.gmra.mxu0 %v1175
    %v1177 = vpop.f32.mrf.mxu0
    %v1178 = vadd.f32 %v963, %v1177
    %v1179 = vand.u32 %v266, 4294901760
    %v1180 = vsub.f32 %v266, %v1179
    %v1181 = vand.u32 %v1180, 4294901760
    %1182 = vmatmul.f32.gmra.mxu0 %v1181
    %v1183 = vpop.f32.mrf.mxu0
    %v1184 = vadd.f32 %v968, %v1183
    %v1185 = vand.u32 %v267, 4294901760
    %v1186 = vsub.f32 %v267, %v1185
    %v1187 = vand.u32 %v1186, 4294901760
    %1188 = vmatmul.f32.gmra.mxu0 %v1187
    %v1189 = vpop.f32.mrf.mxu0
    %v1190 = vadd.f32 %v973, %v1189
    %v1191 = vand.u32 %v268, 4294901760
    %v1192 = vsub.f32 %v268, %v1191
    %v1193 = vand.u32 %v1192, 4294901760
    %1194 = vmatmul.f32.gmra.mxu0 %v1193
    %v1195 = vpop.f32.mrf.mxu0
    %v1196 = vadd.f32 %v978, %v1195
    %v1197 = vand.u32 %v269, 4294901760
    %v1198 = vsub.f32 %v269, %v1197
    %v1199 = vand.u32 %v1198, 4294901760
    %1200 = vmatmul.f32.gmra.mxu0 %v1199
    %v1201 = vpop.f32.mrf.mxu0
    %v1202 = vadd.f32 %v983, %v1201
    %v1203 = vand.u32 %v270, 4294901760
    %v1204 = vsub.f32 %v270, %v1203
    %v1205 = vand.u32 %v1204, 4294901760
    %1206 = vmatmul.f32.gmra.mxu0 %v1205
    %v1207 = vpop.f32.mrf.mxu0
    %v1208 = vadd.f32 %v988, %v1207
    %v1209 = vand.u32 %v271, 4294901760
    %v1210 = vsub.f32 %v271, %v1209
    %v1211 = vand.u32 %v1210, 4294901760
    %1212 = vmatmul.f32.gmra.mxu0 %v1211
    %v1213 = vpop.f32.mrf.mxu0
    %v1214 = vadd.f32 %v993, %v1213
    %v1215 = vand.u32 %v272, 4294901760
    %v1216 = vsub.f32 %v272, %v1215
    %v1217 = vand.u32 %v1216, 4294901760
    %1218 = vmatmul.f32.gmra.mxu0 %v1217
    %v1219 = vpop.f32.mrf.mxu0
    %v1220 = vadd.f32 %v998, %v1219
    %v1221 = vand.u32 %v273, 4294901760
    %v1222 = vsub.f32 %v273, %v1221
    %v1223 = vand.u32 %v1222, 4294901760
    %1224 = vmatmul.f32.gmra.mxu0 %v1223
    %v1225 = vpop.f32.mrf.mxu0
    %v1226 = vadd.f32 %v1003, %v1225
    %v1227 = vand.u32 %v274, 4294901760
    %v1228 = vsub.f32 %v274, %v1227
    %v1229 = vand.u32 %v1228, 4294901760
    %1230 = vmatmul.f32.gmra.mxu0 %v1229
    %v1231 = vpop.f32.mrf.mxu0
    %v1232 = vadd.f32 %v1008, %v1231
    %v1233 = vand.u32 %v275, 4294901760
    %v1234 = vsub.f32 %v275, %v1233
    %v1235 = vand.u32 %v1234, 4294901760
    %1236 = vmatmul.f32.gmra.mxu0 %v1235
    %v1237 = vpop.f32.mrf.mxu0
    %v1238 = vadd.f32 %v1013, %v1237
    %1239 = vdwg.mxu0
    %v1240 = vand.u32 %v291, 4294901760
    %v1241 = vsub.f32 %v291, %v1240
    %v1242 = vand.u32 %v1241, 4294901760
    %1243 = vmatpush.msra.mxu0 %v1242
    %v1244 = vand.u32 %v290, 4294901760
    %v1245 = vsub.f32 %v290, %v1244
    %v1246 = vand.u32 %v1245, 4294901760
    %1247 = vmatpush.msra.mxu0 %v1246
    %v1248 = vand.u32 %v289, 4294901760
    %v1249 = vsub.f32 %v289, %v1248
    %v1250 = vand.u32 %v1249, 4294901760
    %1251 = vmatpush.msra.mxu0 %v1250
    %v1252 = vand.u32 %v288, 4294901760
    %v1253 = vsub.f32 %v288, %v1252
    %v1254 = vand.u32 %v1253, 4294901760
    %1255 = vmatpush.msra.mxu0 %v1254
    %v1256 = vand.u32 %v287, 4294901760
    %v1257 = vsub.f32 %v287, %v1256
    %v1258 = vand.u32 %v1257, 4294901760
    %1259 = vmatpush.msra.mxu0 %v1258
    %v1260 = vand.u32 %v286, 4294901760
    %v1261 = vsub.f32 %v286, %v1260
    %v1262 = vand.u32 %v1261, 4294901760
    %1263 = vmatpush.msra.mxu0 %v1262
    %v1264 = vand.u32 %v285, 4294901760
    %v1265 = vsub.f32 %v285, %v1264
    %v1266 = vand.u32 %v1265, 4294901760
    %1267 = vmatpush.msra.mxu0 %v1266
    %v1268 = vand.u32 %v284, 4294901760
    %v1269 = vsub.f32 %v284, %v1268
    %v1270 = vand.u32 %v1269, 4294901760
    %1271 = vmatpush.msra.mxu0 %v1270
    %v1272 = vand.u32 %v283, 4294901760
    %v1273 = vsub.f32 %v283, %v1272
    %v1274 = vand.u32 %v1273, 4294901760
    %1275 = vmatpush.msra.mxu0 %v1274
    %v1276 = vand.u32 %v282, 4294901760
    %v1277 = vsub.f32 %v282, %v1276
    %v1278 = vand.u32 %v1277, 4294901760
    %1279 = vmatpush.msra.mxu0 %v1278
    %v1280 = vand.u32 %v281, 4294901760
    %v1281 = vsub.f32 %v281, %v1280
    %v1282 = vand.u32 %v1281, 4294901760
    %1283 = vmatpush.msra.mxu0 %v1282
    %v1284 = vand.u32 %v280, 4294901760
    %v1285 = vsub.f32 %v280, %v1284
    %v1286 = vand.u32 %v1285, 4294901760
    %1287 = vmatpush.msra.mxu0 %v1286
    %v1288 = vand.u32 %v279, 4294901760
    %v1289 = vsub.f32 %v279, %v1288
    %v1290 = vand.u32 %v1289, 4294901760
    %1291 = vmatpush.msra.mxu0 %v1290
    %v1292 = vand.u32 %v278, 4294901760
    %v1293 = vsub.f32 %v278, %v1292
    %v1294 = vand.u32 %v1293, 4294901760
    %1295 = vmatpush.msra.mxu0 %v1294
    %v1296 = vand.u32 %v277, 4294901760
    %v1297 = vsub.f32 %v277, %v1296
    %v1298 = vand.u32 %v1297, 4294901760
    %1299 = vmatpush.msra.mxu0 %v1298
    %v1300 = vand.u32 %v276, 4294901760
    %v1301 = vsub.f32 %v276, %v1300
    %v1302 = vand.u32 %v1301, 4294901760
    %1303 = vmatpush.msra.mxu0 %v1302
    %v1304 = vand.u32 %v244, 4294901760
    %1305 = vmatmul.f32.gmra.mxu0 %v1304
    %v1306 = vpop.f32.mrf.mxu0
    %v1307 = vadd.f32 %v1052, %v1306
    %v1308 = vand.u32 %v245, 4294901760
    %1309 = vmatmul.f32.gmra.mxu0 %v1308
    %v1310 = vpop.f32.mrf.mxu0
    %v1311 = vadd.f32 %v1058, %v1310
    %v1312 = vand.u32 %v246, 4294901760
    %1313 = vmatmul.f32.gmra.mxu0 %v1312
    %v1314 = vpop.f32.mrf.mxu0
    %v1315 = vadd.f32 %v1064, %v1314
    %v1316 = vand.u32 %v247, 4294901760
    %1317 = vmatmul.f32.gmra.mxu0 %v1316
    %v1318 = vpop.f32.mrf.mxu0
    %v1319 = vadd.f32 %v1070, %v1318
    %v1320 = vand.u32 %v248, 4294901760
    %1321 = vmatmul.f32.gmra.mxu0 %v1320
    %v1322 = vpop.f32.mrf.mxu0
    %v1323 = vadd.f32 %v1076, %v1322
    %v1324 = vand.u32 %v249, 4294901760
    %1325 = vmatmul.f32.gmra.mxu0 %v1324
    %v1326 = vpop.f32.mrf.mxu0
    %v1327 = vadd.f32 %v1082, %v1326
    %v1328 = vand.u32 %v250, 4294901760
    %1329 = vmatmul.f32.gmra.mxu0 %v1328
    %v1330 = vpop.f32.mrf.mxu0
    %v1331 = vadd.f32 %v1088, %v1330
    %v1332 = vand.u32 %v251, 4294901760
    %1333 = vmatmul.f32.gmra.mxu0 %v1332
    %v1334 = vpop.f32.mrf.mxu0
    %v1335 = vadd.f32 %v1094, %v1334
    %v1336 = vand.u32 %v252, 4294901760
    %1337 = vmatmul.f32.gmra.mxu0 %v1336
    %v1338 = vpop.f32.mrf.mxu0
    %v1339 = vadd.f32 %v1100, %v1338
    %v1340 = vand.u32 %v253, 4294901760
    %1341 = vmatmul.f32.gmra.mxu0 %v1340
    %v1342 = vpop.f32.mrf.mxu0
    %v1343 = vadd.f32 %v1106, %v1342
    %v1344 = vand.u32 %v254, 4294901760
    %1345 = vmatmul.f32.gmra.mxu0 %v1344
    %v1346 = vpop.f32.mrf.mxu0
    %v1347 = vadd.f32 %v1112, %v1346
    %v1348 = vand.u32 %v255, 4294901760
    %1349 = vmatmul.f32.gmra.mxu0 %v1348
    %v1350 = vpop.f32.mrf.mxu0
    %v1351 = vadd.f32 %v1118, %v1350
    %v1352 = vand.u32 %v256, 4294901760
    %1353 = vmatmul.f32.gmra.mxu0 %v1352
    %v1354 = vpop.f32.mrf.mxu0
    %v1355 = vadd.f32 %v1124, %v1354
    %v1356 = vand.u32 %v257, 4294901760
    %1357 = vmatmul.f32.gmra.mxu0 %v1356
    %v1358 = vpop.f32.mrf.mxu0
    %v1359 = vadd.f32 %v1130, %v1358
    %v1360 = vand.u32 %v258, 4294901760
    %1361 = vmatmul.f32.gmra.mxu0 %v1360
    %v1362 = vpop.f32.mrf.mxu0
    %v1363 = vadd.f32 %v1136, %v1362
    %v1364 = vand.u32 %v259, 4294901760
    %1365 = vmatmul.f32.gmra.mxu0 %v1364
    %v1366 = vpop.f32.mrf.mxu0
    %v1367 = vadd.f32 %v1142, %v1366
    %v1368 = vand.u32 %v260, 4294901760
    %1369 = vmatmul.f32.gmra.mxu0 %v1368
    %v1370 = vpop.f32.mrf.mxu0
    %v1371 = vadd.f32 %v1148, %v1370
    %v1372 = vand.u32 %v261, 4294901760
    %1373 = vmatmul.f32.gmra.mxu0 %v1372
    %v1374 = vpop.f32.mrf.mxu0
    %v1375 = vadd.f32 %v1154, %v1374
    %v1376 = vand.u32 %v262, 4294901760
    %1377 = vmatmul.f32.gmra.mxu0 %v1376
    %v1378 = vpop.f32.mrf.mxu0
    %v1379 = vadd.f32 %v1160, %v1378
    %v1380 = vand.u32 %v263, 4294901760
    %1381 = vmatmul.f32.gmra.mxu0 %v1380
    %v1382 = vpop.f32.mrf.mxu0
    %v1383 = vadd.f32 %v1166, %v1382
    %v1384 = vand.u32 %v264, 4294901760
    %1385 = vmatmul.f32.gmra.mxu0 %v1384
    %v1386 = vpop.f32.mrf.mxu0
    %v1387 = vadd.f32 %v1172, %v1386
    %v1388 = vand.u32 %v265, 4294901760
    %1389 = vmatmul.f32.gmra.mxu0 %v1388
    %v1390 = vpop.f32.mrf.mxu0
    %v1391 = vadd.f32 %v1178, %v1390
    %v1392 = vand.u32 %v266, 4294901760
    %1393 = vmatmul.f32.gmra.mxu0 %v1392
    %v1394 = vpop.f32.mrf.mxu0
    %v1395 = vadd.f32 %v1184, %v1394
    %v1396 = vand.u32 %v267, 4294901760
    %1397 = vmatmul.f32.gmra.mxu0 %v1396
    %v1398 = vpop.f32.mrf.mxu0
    %v1399 = vadd.f32 %v1190, %v1398
    %v1400 = vand.u32 %v268, 4294901760
    %1401 = vmatmul.f32.gmra.mxu0 %v1400
    %v1402 = vpop.f32.mrf.mxu0
    %v1403 = vadd.f32 %v1196, %v1402
    %v1404 = vand.u32 %v269, 4294901760
    %1405 = vmatmul.f32.gmra.mxu0 %v1404
    %v1406 = vpop.f32.mrf.mxu0
    %v1407 = vadd.f32 %v1202, %v1406
    %v1408 = vand.u32 %v270, 4294901760
    %1409 = vmatmul.f32.gmra.mxu0 %v1408
    %v1410 = vpop.f32.mrf.mxu0
    %v1411 = vadd.f32 %v1208, %v1410
    %v1412 = vand.u32 %v271, 4294901760
    %1413 = vmatmul.f32.gmra.mxu0 %v1412
    %v1414 = vpop.f32.mrf.mxu0
    %v1415 = vadd.f32 %v1214, %v1414
    %v1416 = vand.u32 %v272, 4294901760
    %1417 = vmatmul.f32.gmra.mxu0 %v1416
    %v1418 = vpop.f32.mrf.mxu0
    %v1419 = vadd.f32 %v1220, %v1418
    %v1420 = vand.u32 %v273, 4294901760
    %1421 = vmatmul.f32.gmra.mxu0 %v1420
    %v1422 = vpop.f32.mrf.mxu0
    %v1423 = vadd.f32 %v1226, %v1422
    %v1424 = vand.u32 %v274, 4294901760
    %1425 = vmatmul.f32.gmra.mxu0 %v1424
    %v1426 = vpop.f32.mrf.mxu0
    %v1427 = vadd.f32 %v1232, %v1426
    %v1428 = vand.u32 %v275, 4294901760
    %1429 = vmatmul.f32.gmra.mxu0 %v1428
    %v1430 = vpop.f32.mrf.mxu0
    %v1431 = vadd.f32 %v1238, %v1430
    %1432 = vdwg.mxu0
    %v1433 = vand.u32 %v291, 4294901760
    %1434 = vmatpush.msra.mxu0 %v1433
    %v1435 = vand.u32 %v290, 4294901760
    %1436 = vmatpush.msra.mxu0 %v1435
    %v1437 = vand.u32 %v289, 4294901760
    %1438 = vmatpush.msra.mxu0 %v1437
    %v1439 = vand.u32 %v288, 4294901760
    %1440 = vmatpush.msra.mxu0 %v1439
    %v1441 = vand.u32 %v287, 4294901760
    %1442 = vmatpush.msra.mxu0 %v1441
    %v1443 = vand.u32 %v286, 4294901760
    %1444 = vmatpush.msra.mxu0 %v1443
    %v1445 = vand.u32 %v285, 4294901760
    %1446 = vmatpush.msra.mxu0 %v1445
    %v1447 = vand.u32 %v284, 4294901760
    %1448 = vmatpush.msra.mxu0 %v1447
    %v1449 = vand.u32 %v283, 4294901760
    %1450 = vmatpush.msra.mxu0 %v1449
    %v1451 = vand.u32 %v282, 4294901760
    %1452 = vmatpush.msra.mxu0 %v1451
    %v1453 = vand.u32 %v281, 4294901760
    %1454 = vmatpush.msra.mxu0 %v1453
    %v1455 = vand.u32 %v280, 4294901760
    %1456 = vmatpush.msra.mxu0 %v1455
    %v1457 = vand.u32 %v279, 4294901760
    %1458 = vmatpush.msra.mxu0 %v1457
    %v1459 = vand.u32 %v278, 4294901760
    %1460 = vmatpush.msra.mxu0 %v1459
    %v1461 = vand.u32 %v277, 4294901760
    %1462 = vmatpush.msra.mxu0 %v1461
    %v1463 = vand.u32 %v276, 4294901760
    %1464 = vmatpush.msra.mxu0 %v1463
    %v1465 = vand.u32 %v244, 4294901760
    %1466 = vmatmul.f32.gmra.mxu0 %v1465
    %v1467 = vpop.f32.mrf.mxu0
    %v1468 = vadd.f32 %v1307, %v1467
    %v1469 = vand.u32 %v245, 4294901760
    %1470 = vmatmul.f32.gmra.mxu0 %v1469
    %v1471 = vpop.f32.mrf.mxu0
    %v1472 = vadd.f32 %v1311, %v1471
    %v1473 = vand.u32 %v246, 4294901760
    %1474 = vmatmul.f32.gmra.mxu0 %v1473
    %v1475 = vpop.f32.mrf.mxu0
    %v1476 = vadd.f32 %v1315, %v1475
    %v1477 = vand.u32 %v247, 4294901760
    %1478 = vmatmul.f32.gmra.mxu0 %v1477
    %v1479 = vpop.f32.mrf.mxu0
    %v1480 = vadd.f32 %v1319, %v1479
    %v1481 = vand.u32 %v248, 4294901760
    %1482 = vmatmul.f32.gmra.mxu0 %v1481
    %v1483 = vpop.f32.mrf.mxu0
    %v1484 = vadd.f32 %v1323, %v1483
    %v1485 = vand.u32 %v249, 4294901760
    %1486 = vmatmul.f32.gmra.mxu0 %v1485
    %v1487 = vpop.f32.mrf.mxu0
    %v1488 = vadd.f32 %v1327, %v1487
    %v1489 = vand.u32 %v250, 4294901760
    %1490 = vmatmul.f32.gmra.mxu0 %v1489
    %v1491 = vpop.f32.mrf.mxu0
    %v1492 = vadd.f32 %v1331, %v1491
    %v1493 = vand.u32 %v251, 4294901760
    %1494 = vmatmul.f32.gmra.mxu0 %v1493
    %v1495 = vpop.f32.mrf.mxu0
    %v1496 = vadd.f32 %v1335, %v1495
    %v1497 = vand.u32 %v252, 4294901760
    %1498 = vmatmul.f32.gmra.mxu0 %v1497
    %v1499 = vpop.f32.mrf.mxu0
    %v1500 = vadd.f32 %v1339, %v1499
    %v1501 = vand.u32 %v253, 4294901760
    %1502 = vmatmul.f32.gmra.mxu0 %v1501
    %v1503 = vpop.f32.mrf.mxu0
    %v1504 = vadd.f32 %v1343, %v1503
    %v1505 = vand.u32 %v254, 4294901760
    %1506 = vmatmul.f32.gmra.mxu0 %v1505
    %v1507 = vpop.f32.mrf.mxu0
    %v1508 = vadd.f32 %v1347, %v1507
    %v1509 = vand.u32 %v255, 4294901760
    %1510 = vmatmul.f32.gmra.mxu0 %v1509
    %v1511 = vpop.f32.mrf.mxu0
    %v1512 = vadd.f32 %v1351, %v1511
    %v1513 = vand.u32 %v256, 4294901760
    %1514 = vmatmul.f32.gmra.mxu0 %v1513
    %v1515 = vpop.f32.mrf.mxu0
    %v1516 = vadd.f32 %v1355, %v1515
    %v1517 = vand.u32 %v257, 4294901760
    %1518 = vmatmul.f32.gmra.mxu0 %v1517
    %v1519 = vpop.f32.mrf.mxu0
    %v1520 = vadd.f32 %v1359, %v1519
    %v1521 = vand.u32 %v258, 4294901760
    %1522 = vmatmul.f32.gmra.mxu0 %v1521
    %v1523 = vpop.f32.mrf.mxu0
    %v1524 = vadd.f32 %v1363, %v1523
    %v1525 = vand.u32 %v259, 4294901760
    %1526 = vmatmul.f32.gmra.mxu0 %v1525
    %v1527 = vpop.f32.mrf.mxu0
    %v1528 = vadd.f32 %v1367, %v1527
    %v1529 = vand.u32 %v260, 4294901760
    %1530 = vmatmul.f32.gmra.mxu0 %v1529
    %v1531 = vpop.f32.mrf.mxu0
    %v1532 = vadd.f32 %v1371, %v1531
    %v1533 = vand.u32 %v261, 4294901760
    %1534 = vmatmul.f32.gmra.mxu0 %v1533
    %v1535 = vpop.f32.mrf.mxu0
    %v1536 = vadd.f32 %v1375, %v1535
    %v1537 = vand.u32 %v262, 4294901760
    %1538 = vmatmul.f32.gmra.mxu0 %v1537
    %v1539 = vpop.f32.mrf.mxu0
    %v1540 = vadd.f32 %v1379, %v1539
    %v1541 = vand.u32 %v263, 4294901760
    %1542 = vmatmul.f32.gmra.mxu0 %v1541
    %v1543 = vpop.f32.mrf.mxu0
    %v1544 = vadd.f32 %v1383, %v1543
    %v1545 = vand.u32 %v264, 4294901760
    %1546 = vmatmul.f32.gmra.mxu0 %v1545
    %v1547 = vpop.f32.mrf.mxu0
    %v1548 = vadd.f32 %v1387, %v1547
    %v1549 = vand.u32 %v265, 4294901760
    %1550 = vmatmul.f32.gmra.mxu0 %v1549
    %v1551 = vpop.f32.mrf.mxu0
    %v1552 = vadd.f32 %v1391, %v1551
    %v1553 = vand.u32 %v266, 4294901760
    %1554 = vmatmul.f32.gmra.mxu0 %v1553
    %v1555 = vpop.f32.mrf.mxu0
    %v1556 = vadd.f32 %v1395, %v1555
    %v1557 = vand.u32 %v267, 4294901760
    %1558 = vmatmul.f32.gmra.mxu0 %v1557
    %v1559 = vpop.f32.mrf.mxu0
    %v1560 = vadd.f32 %v1399, %v1559
    %v1561 = vand.u32 %v268, 4294901760
    %1562 = vmatmul.f32.gmra.mxu0 %v1561
    %v1563 = vpop.f32.mrf.mxu0
    %v1564 = vadd.f32 %v1403, %v1563
    %v1565 = vand.u32 %v269, 4294901760
    %1566 = vmatmul.f32.gmra.mxu0 %v1565
    %v1567 = vpop.f32.mrf.mxu0
    %v1568 = vadd.f32 %v1407, %v1567
    %v1569 = vand.u32 %v270, 4294901760
    %1570 = vmatmul.f32.gmra.mxu0 %v1569
    %v1571 = vpop.f32.mrf.mxu0
    %v1572 = vadd.f32 %v1411, %v1571
    %v1573 = vand.u32 %v271, 4294901760
    %1574 = vmatmul.f32.gmra.mxu0 %v1573
    %v1575 = vpop.f32.mrf.mxu0
    %v1576 = vadd.f32 %v1415, %v1575
    %v1577 = vand.u32 %v272, 4294901760
    %1578 = vmatmul.f32.gmra.mxu0 %v1577
    %v1579 = vpop.f32.mrf.mxu0
    %v1580 = vadd.f32 %v1419, %v1579
    %v1581 = vand.u32 %v273, 4294901760
    %1582 = vmatmul.f32.gmra.mxu0 %v1581
    %v1583 = vpop.f32.mrf.mxu0
    %v1584 = vadd.f32 %v1423, %v1583
    %v1585 = vand.u32 %v274, 4294901760
    %1586 = vmatmul.f32.gmra.mxu0 %v1585
    %v1587 = vpop.f32.mrf.mxu0
    %v1588 = vadd.f32 %v1427, %v1587
    %v1589 = vand.u32 %v275, 4294901760
    %1590 = vmatmul.f32.gmra.mxu0 %v1589
    %v1591 = vpop.f32.mrf.mxu0
    %v1592 = vadd.f32 %v1431, %v1591
    %1593 = vdwg.mxu0
    %1594 = vst [vmem:[#allocation2] sm:$0xff] %v1468
    %1595 = vst [vmem:[#allocation2 + $0x8] sm:$0xff] %v1472
    %1596 = vst [vmem:[#allocation2 + $0x10] sm:$0xff] %v1476
    %1597 = vst [vmem:[#allocation2 + $0x18] sm:$0xff] %v1480
    %1598 = vst [vmem:[#allocation2 + $0x20] sm:$0xff] %v1484
    %1599 = vst [vmem:[#allocation2 + $0x28] sm:$0xff] %v1488
    %1600 = vst [vmem:[#allocation2 + $0x30] sm:$0xff] %v1492
    %1601 = vst [vmem:[#allocation2 + $0x38] sm:$0xff] %v1496
    %1602 = vst [vmem:[#allocation2 + $0x40] sm:$0xff] %v1500
    %1603 = vst [vmem:[#allocation2 + $0x48] sm:$0xff] %v1504
    %1604 = vst [vmem:[#allocation2 + $0x50] sm:$0xff] %v1508
    %1605 = vst [vmem:[#allocation2 + $0x58] sm:$0xff] %v1512
    %1606 = vst [vmem:[#allocation2 + $0x60] sm:$0xff] %v1516
    %1607 = vst [vmem:[#allocation2 + $0x68] sm:$0xff] %v1520
    %1608 = vst [vmem:[#allocation2 + $0x70] sm:$0xff] %v1524
    %1609 = vst [vmem:[#allocation2 + $0x78] sm:$0xff] %v1528
    %1610 = vst [vmem:[#allocation2 + $0x80] sm:$0xff] %v1532
    %1611 = vst [vmem:[#allocation2 + $0x88] sm:$0xff] %v1536
    %1612 = vst [vmem:[#allocation2 + $0x90] sm:$0xff] %v1540
    %1613 = vst [vmem:[#allocation2 + $0x98] sm:$0xff] %v1544
    %1614 = vst [vmem:[#allocation2 + $0xa0] sm:$0xff] %v1548
    %1615 = vst [vmem:[#allocation2 + $0xa8] sm:$0xff] %v1552
    %1616 = vst [vmem:[#allocation2 + $0xb0] sm:$0xff] %v1556
    %1617 = vst [vmem:[#allocation2 + $0xb8] sm:$0xff] %v1560
    %1618 = vst [vmem:[#allocation2 + $0xc0] sm:$0xff] %v1564
    %1619 = vst [vmem:[#allocation2 + $0xc8] sm:$0xff] %v1568
    %1620 = vst [vmem:[#allocation2 + $0xd0] sm:$0xff] %v1572
    %1621 = vst [vmem:[#allocation2 + $0xd8] sm:$0xff] %v1576
    %1622 = vst [vmem:[#allocation2 + $0xe0] sm:$0xff] %v1580
    %1623 = vst [vmem:[#allocation2 + $0xe8] sm:$0xff] %v1584
    %1624 = vst [vmem:[#allocation2 + $0xf0] sm:$0xff] %v1588
    %1625 = vst [vmem:[#allocation2 + $0xf8] sm:$0xff] %v1592
    %1626 = vmax.xlane.f32.xlu0 %v1468
    %v1627 = vpop.xlane.xlu0 %1626
    %1628 = vmax.xlane.f32.xlu0 %v1472
    %v1629 = vpop.xlane.xlu0 %1628
    %1630 = vmax.xlane.f32.xlu0 %v1476
    %v1631 = vpop.xlane.xlu0 %1630
    %1632 = vmax.xlane.f32.xlu0 %v1480
    %v1633 = vpop.xlane.xlu0 %1632
    %1634 = vmax.xlane.f32.xlu0 %v1484
    %v1635 = vpop.xlane.xlu0 %1634
    %1636 = vmax.xlane.f32.xlu0 %v1488
    %v1637 = vpop.xlane.xlu0 %1636
    %1638 = vmax.xlane.f32.xlu0 %v1492
    %v1639 = vpop.xlane.xlu0 %1638
    %1640 = vmax.xlane.f32.xlu0 %v1496
    %v1641 = vpop.xlane.xlu0 %1640
    %1642 = vmax.xlane.f32.xlu0 %v1500
    %v1643 = vpop.xlane.xlu0 %1642
    %1644 = vmax.xlane.f32.xlu0 %v1504
    %v1645 = vpop.xlane.xlu0 %1644
    %1646 = vmax.xlane.f32.xlu0 %v1508
    %v1647 = vpop.xlane.xlu0 %1646
    %1648 = vmax.xlane.f32.xlu0 %v1512
    %v1649 = vpop.xlane.xlu0 %1648
    %1650 = vmax.xlane.f32.xlu0 %v1516
    %v1651 = vpop.xlane.xlu0 %1650
    %1652 = vmax.xlane.f32.xlu0 %v1520
    %v1653 = vpop.xlane.xlu0 %1652
    %1654 = vmax.xlane.f32.xlu0 %v1524
    %v1655 = vpop.xlane.xlu0 %1654
    %1656 = vmax.xlane.f32.xlu0 %v1528
    %v1657 = vpop.xlane.xlu0 %1656
    %1658 = vmax.xlane.f32.xlu0 %v1532
    %v1659 = vpop.xlane.xlu0 %1658
    %1660 = vmax.xlane.f32.xlu0 %v1536
    %v1661 = vpop.xlane.xlu0 %1660
    %1662 = vmax.xlane.f32.xlu0 %v1540
    %v1663 = vpop.xlane.xlu0 %1662
    %1664 = vmax.xlane.f32.xlu0 %v1544
    %v1665 = vpop.xlane.xlu0 %1664
    %1666 = vmax.xlane.f32.xlu0 %v1548
    %v1667 = vpop.xlane.xlu0 %1666
    %1668 = vmax.xlane.f32.xlu0 %v1552
    %v1669 = vpop.xlane.xlu0 %1668
    %1670 = vmax.xlane.f32.xlu0 %v1556
    %v1671 = vpop.xlane.xlu0 %1670
    %1672 = vmax.xlane.f32.xlu0 %v1560
    %v1673 = vpop.xlane.xlu0 %1672
    %1674 = vmax.xlane.f32.xlu0 %v1564
    %v1675 = vpop.xlane.xlu0 %1674
    %1676 = vmax.xlane.f32.xlu0 %v1568
    %v1677 = vpop.xlane.xlu0 %1676
    %1678 = vmax.xlane.f32.xlu0 %v1572
    %v1679 = vpop.xlane.xlu0 %1678
    %1680 = vmax.xlane.f32.xlu0 %v1576
    %v1681 = vpop.xlane.xlu0 %1680
    %1682 = vmax.xlane.f32.xlu0 %v1580
    %v1683 = vpop.xlane.xlu0 %1682
    %1684 = vmax.xlane.f32.xlu0 %v1584
    %v1685 = vpop.xlane.xlu0 %1684
    %1686 = vmax.xlane.f32.xlu0 %v1588
    %v1687 = vpop.xlane.xlu0 %1686
    %1688 = vmax.xlane.f32.xlu0 %v1592
    %v1689 = vpop.xlane.xlu0 %1688
    %v1690 = vsub.f32 %v1468, %v1627
    %v1691 = vsub.f32 %v1472, %v1629
    %v1692 = vsub.f32 %v1476, %v1631
    %v1693 = vsub.f32 %v1480, %v1633
    %v1694 = vsub.f32 %v1484, %v1635
    %v1695 = vsub.f32 %v1488, %v1637
    %v1696 = vsub.f32 %v1492, %v1639
    %v1697 = vsub.f32 %v1496, %v1641
    %v1698 = vsub.f32 %v1500, %v1643
    %v1699 = vsub.f32 %v1504, %v1645
    %v1700 = vsub.f32 %v1508, %v1647
    %v1701 = vsub.f32 %v1512, %v1649
    %v1702 = vsub.f32 %v1516, %v1651
    %v1703 = vsub.f32 %v1520, %v1653
    %v1704 = vsub.f32 %v1524, %v1655
    %v1705 = vsub.f32 %v1528, %v1657
    %v1706 = vsub.f32 %v1532, %v1659
    %v1707 = vsub.f32 %v1536, %v1661
    %v1708 = vsub.f32 %v1540, %v1663
    %v1709 = vsub.f32 %v1544, %v1665
    %v1710 = vsub.f32 %v1548, %v1667
    %v1711 = vsub.f32 %v1552, %v1669
    %v1712 = vsub.f32 %v1556, %v1671
    %v1713 = vsub.f32 %v1560, %v1673
    %v1714 = vsub.f32 %v1564, %v1675
    %v1715 = vsub.f32 %v1568, %v1677
    %v1716 = vsub.f32 %v1572, %v1679
    %v1717 = vsub.f32 %v1576, %v1681
    %v1718 = vsub.f32 %v1580, %v1683
    %v1719 = vsub.f32 %v1584, %v1685
    %v1720 = vsub.f32 %v1588, %v1687
    %v1721 = vsub.f32 %v1592, %v1689
    %v1722 = vmul.f32 %v1690, 1.442695
    %v1723 = vpow.pop %v1722
    %v1724 = vmul.f32 %v1691, 1.442695
    %v1725 = vpow.pop %v1724
    %v1726 = vmul.f32 %v1692, 1.442695
    %v1727 = vpow.pop %v1726
    %v1728 = vmul.f32 %v1693, 1.442695
    %v1729 = vpow.pop %v1728
    %v1730 = vmul.f32 %v1694, 1.442695
    %v1731 = vpow.pop %v1730
    %v1732 = vmul.f32 %v1695, 1.442695
    %v1733 = vpow.pop %v1732
    %v1734 = vmul.f32 %v1696, 1.442695
    %v1735 = vpow.pop %v1734
    %v1736 = vmul.f32 %v1697, 1.442695
    %v1737 = vpow.pop %v1736
    %v1738 = vmul.f32 %v1698, 1.442695
    %v1739 = vpow.pop %v1738
    %v1740 = vmul.f32 %v1699, 1.442695
    %v1741 = vpow.pop %v1740
    %v1742 = vmul.f32 %v1700, 1.442695
    %v1743 = vpow.pop %v1742
    %v1744 = vmul.f32 %v1701, 1.442695
    %v1745 = vpow.pop %v1744
    %v1746 = vmul.f32 %v1702, 1.442695
    %v1747 = vpow.pop %v1746
    %v1748 = vmul.f32 %v1703, 1.442695
    %v1749 = vpow.pop %v1748
    %v1750 = vmul.f32 %v1704, 1.442695
    %v1751 = vpow.pop %v1750
    %v1752 = vmul.f32 %v1705, 1.442695
    %v1753 = vpow.pop %v1752
    %v1754 = vmul.f32 %v1706, 1.442695
    %v1755 = vpow.pop %v1754
    %v1756 = vmul.f32 %v1707, 1.442695
    %v1757 = vpow.pop %v1756
    %v1758 = vmul.f32 %v1708, 1.442695
    %v1759 = vpow.pop %v1758
    %v1760 = vmul.f32 %v1709, 1.442695
    %v1761 = vpow.pop %v1760
    %v1762 = vmul.f32 %v1710, 1.442695
    %v1763 = vpow.pop %v1762
    %v1764 = vmul.f32 %v1711, 1.442695
    %v1765 = vpow.pop %v1764
    %v1766 = vmul.f32 %v1712, 1.442695
    %v1767 = vpow.pop %v1766
    %v1768 = vmul.f32 %v1713, 1.442695
    %v1769 = vpow.pop %v1768
    %v1770 = vmul.f32 %v1714, 1.442695
    %v1771 = vpow.pop %v1770
    %v1772 = vmul.f32 %v1715, 1.442695
    %v1773 = vpow.pop %v1772
    %v1774 = vmul.f32 %v1716, 1.442695
    %v1775 = vpow.pop %v1774
    %v1776 = vmul.f32 %v1717, 1.442695
    %v1777 = vpow.pop %v1776
    %v1778 = vmul.f32 %v1718, 1.442695
    %v1779 = vpow.pop %v1778
    %v1780 = vmul.f32 %v1719, 1.442695
    %v1781 = vpow.pop %v1780
    %v1782 = vmul.f32 %v1720, 1.442695
    %v1783 = vpow.pop %v1782
    %v1784 = vmul.f32 %v1721, 1.442695
    %v1785 = vpow.pop %v1784
    %1786 = vadd.xlane.f32.xlu0 %v1723
    %v1787 = vpop.xlane.xlu0 %1786
    %1788 = vadd.xlane.f32.xlu0 %v1725
    %v1789 = vpop.xlane.xlu0 %1788
    %1790 = vadd.xlane.f32.xlu0 %v1727
    %v1791 = vpop.xlane.xlu0 %1790
    %1792 = vadd.xlane.f32.xlu0 %v1729
    %v1793 = vpop.xlane.xlu0 %1792
    %1794 = vadd.xlane.f32.xlu0 %v1731
    %v1795 = vpop.xlane.xlu0 %1794
    %1796 = vadd.xlane.f32.xlu0 %v1733
    %v1797 = vpop.xlane.xlu0 %1796
    %1798 = vadd.xlane.f32.xlu0 %v1735
    %v1799 = vpop.xlane.xlu0 %1798
    %1800 = vadd.xlane.f32.xlu0 %v1737
    %v1801 = vpop.xlane.xlu0 %1800
    %1802 = vadd.xlane.f32.xlu0 %v1739
    %v1803 = vpop.xlane.xlu0 %1802
    %1804 = vadd.xlane.f32.xlu0 %v1741
    %v1805 = vpop.xlane.xlu0 %1804
    %1806 = vadd.xlane.f32.xlu0 %v1743
    %v1807 = vpop.xlane.xlu0 %1806
    %1808 = vadd.xlane.f32.xlu0 %v1745
    %v1809 = vpop.xlane.xlu0 %1808
    %1810 = vadd.xlane.f32.xlu0 %v1747
    %v1811 = vpop.xlane.xlu0 %1810
    %1812 = vadd.xlane.f32.xlu0 %v1749
    %v1813 = vpop.xlane.xlu0 %1812
    %1814 = vadd.xlane.f32.xlu0 %v1751
    %v1815 = vpop.xlane.xlu0 %1814
    %1816 = vadd.xlane.f32.xlu0 %v1753
    %v1817 = vpop.xlane.xlu0 %1816
    %1818 = vadd.xlane.f32.xlu0 %v1755
    %v1819 = vpop.xlane.xlu0 %1818
    %1820 = vadd.xlane.f32.xlu0 %v1757
    %v1821 = vpop.xlane.xlu0 %1820
    %1822 = vadd.xlane.f32.xlu0 %v1759
    %v1823 = vpop.xlane.xlu0 %1822
    %1824 = vadd.xlane.f32.xlu0 %v1761
    %v1825 = vpop.xlane.xlu0 %1824
    %1826 = vadd.xlane.f32.xlu0 %v1763
    %v1827 = vpop.xlane.xlu0 %1826
    %1828 = vadd.xlane.f32.xlu0 %v1765
    %v1829 = vpop.xlane.xlu0 %1828
    %1830 = vadd.xlane.f32.xlu0 %v1767
    %v1831 = vpop.xlane.xlu0 %1830
    %1832 = vadd.xlane.f32.xlu0 %v1769
    %v1833 = vpop.xlane.xlu0 %1832
    %1834 = vadd.xlane.f32.xlu0 %v1771
    %v1835 = vpop.xlane.xlu0 %1834
    %1836 = vadd.xlane.f32.xlu0 %v1773
    %v1837 = vpop.xlane.xlu0 %1836
    %1838 = vadd.xlane.f32.xlu0 %v1775
    %v1839 = vpop.xlane.xlu0 %1838
    %1840 = vadd.xlane.f32.xlu0 %v1777
    %v1841 = vpop.xlane.xlu0 %1840
    %1842 = vadd.xlane.f32.xlu0 %v1779
    %v1843 = vpop.xlane.xlu0 %1842
    %1844 = vadd.xlane.f32.xlu0 %v1781
    %v1845 = vpop.xlane.xlu0 %1844
    %1846 = vadd.xlane.f32.xlu0 %v1783
    %v1847 = vpop.xlane.xlu0 %1846
    %1848 = vadd.xlane.f32.xlu0 %v1785
    %v1849 = vpop.xlane.xlu0 %1848
    %v1850 = vlog2.pop %v1787
    %v1851 = vmul.f32 %v1850, 0.6931472
    %v1852 = vlog2.pop %v1789
    %v1853 = vmul.f32 %v1852, 0.6931472
    %v1854 = vlog2.pop %v1791
    %v1855 = vmul.f32 %v1854, 0.6931472
    %v1856 = vlog2.pop %v1793
    %v1857 = vmul.f32 %v1856, 0.6931472
    %v1858 = vlog2.pop %v1795
    %v1859 = vmul.f32 %v1858, 0.6931472
    %v1860 = vlog2.pop %v1797
    %v1861 = vmul.f32 %v1860, 0.6931472
    %v1862 = vlog2.pop %v1799
    %v1863 = vmul.f32 %v1862, 0.6931472
    %v1864 = vlog2.pop %v1801
    %v1865 = vmul.f32 %v1864, 0.6931472
    %v1866 = vlog2.pop %v1803
    %v1867 = vmul.f32 %v1866, 0.6931472
    %v1868 = vlog2.pop %v1805
    %v1869 = vmul.f32 %v1868, 0.6931472
    %v1870 = vlog2.pop %v1807
    %v1871 = vmul.f32 %v1870, 0.6931472
    %v1872 = vlog2.pop %v1809
    %v1873 = vmul.f32 %v1872, 0.6931472
    %v1874 = vlog2.pop %v1811
    %v1875 = vmul.f32 %v1874, 0.6931472
    %v1876 = vlog2.pop %v1813
    %v1877 = vmul.f32 %v1876, 0.6931472
    %v1878 = vlog2.pop %v1815
    %v1879 = vmul.f32 %v1878, 0.6931472
    %v1880 = vlog2.pop %v1817
    %v1881 = vmul.f32 %v1880, 0.6931472
    %v1882 = vlog2.pop %v1819
    %v1883 = vmul.f32 %v1882, 0.6931472
    %v1884 = vlog2.pop %v1821
    %v1885 = vmul.f32 %v1884, 0.6931472
    %v1886 = vlog2.pop %v1823
    %v1887 = vmul.f32 %v1886, 0.6931472
    %v1888 = vlog2.pop %v1825
    %v1889 = vmul.f32 %v1888, 0.6931472
    %v1890 = vlog2.pop %v1827
    %v1891 = vmul.f32 %v1890, 0.6931472
    %v1892 = vlog2.pop %v1829
    %v1893 = vmul.f32 %v1892, 0.6931472
    %v1894 = vlog2.pop %v1831
    %v1895 = vmul.f32 %v1894, 0.6931472
    %v1896 = vlog2.pop %v1833
    %v1897 = vmul.f32 %v1896, 0.6931472
    %v1898 = vlog2.pop %v1835
    %v1899 = vmul.f32 %v1898, 0.6931472
    %v1900 = vlog2.pop %v1837
    %v1901 = vmul.f32 %v1900, 0.6931472
    %v1902 = vlog2.pop %v1839
    %v1903 = vmul.f32 %v1902, 0.6931472
    %v1904 = vlog2.pop %v1841
    %v1905 = vmul.f32 %v1904, 0.6931472
    %v1906 = vlog2.pop %v1843
    %v1907 = vmul.f32 %v1906, 0.6931472
    %v1908 = vlog2.pop %v1845
    %v1909 = vmul.f32 %v1908, 0.6931472
    %v1910 = vlog2.pop %v1847
    %v1911 = vmul.f32 %v1910, 0.6931472
    %v1912 = vlog2.pop %v1849
    %v1913 = vmul.f32 %v1912, 0.6931472
    %v1914 = vadd.f32 %v1627, %v1851
    %v1915 = vadd.f32 %v1629, %v1853
    %v1916 = vadd.f32 %v1631, %v1855
    %v1917 = vadd.f32 %v1633, %v1857
    %v1918 = vadd.f32 %v1635, %v1859
    %v1919 = vadd.f32 %v1637, %v1861
    %v1920 = vadd.f32 %v1639, %v1863
    %v1921 = vadd.f32 %v1641, %v1865
    %v1922 = vadd.f32 %v1643, %v1867
    %v1923 = vadd.f32 %v1645, %v1869
    %v1924 = vadd.f32 %v1647, %v1871
    %v1925 = vadd.f32 %v1649, %v1873
    %v1926 = vadd.f32 %v1651, %v1875
    %v1927 = vadd.f32 %v1653, %v1877
    %v1928 = vadd.f32 %v1655, %v1879
    %v1929 = vadd.f32 %v1657, %v1881
    %v1930 = vadd.f32 %v1659, %v1883
    %v1931 = vadd.f32 %v1661, %v1885
    %v1932 = vadd.f32 %v1663, %v1887
    %v1933 = vadd.f32 %v1665, %v1889
    %v1934 = vadd.f32 %v1667, %v1891
    %v1935 = vadd.f32 %v1669, %v1893
    %v1936 = vadd.f32 %v1671, %v1895
    %v1937 = vadd.f32 %v1673, %v1897
    %v1938 = vadd.f32 %v1675, %v1899
    %v1939 = vadd.f32 %v1677, %v1901
    %v1940 = vadd.f32 %v1679, %v1903
    %v1941 = vadd.f32 %v1681, %v1905
    %v1942 = vadd.f32 %v1683, %v1907
    %v1943 = vadd.f32 %v1685, %v1909
    %v1944 = vadd.f32 %v1687, %v1911
    %v1945 = vadd.f32 %v1689, %v1913
    %1946 = vset.pattern.permute.xlu0 0
    %1947 = vperm.xlu0 %1946, %v50
    %v1948 = vpop.permute.xlu0 %1947
    %1949 = vset.pattern.permute.xlu0 0
    %1950 = vperm.xlu0 %1949, %v51
    %v1951 = vpop.permute.xlu0 %1950
    %1952 = vset.pattern.permute.xlu0 0
    %1953 = vperm.xlu0 %1952, %v52
    %v1954 = vpop.permute.xlu0 %1953
    %1955 = vset.pattern.permute.xlu0 0
    %1956 = vperm.xlu0 %1955, %v53
    %v1957 = vpop.permute.xlu0 %1956
    %1958 = vset.pattern.permute.xlu0 0
    %1959 = vperm.xlu0 %1958, %v54
    %v1960 = vpop.permute.xlu0 %1959
    %1961 = vset.pattern.permute.xlu0 0
    %1962 = vperm.xlu0 %1961, %v55
    %v1963 = vpop.permute.xlu0 %1962
    %1964 = vset.pattern.permute.xlu0 0
    %1965 = vperm.xlu0 %1964, %v56
    %v1966 = vpop.permute.xlu0 %1965
    %1967 = vset.pattern.permute.xlu0 0
    %1968 = vperm.xlu0 %1967, %v57
    %v1969 = vpop.permute.xlu0 %1968
    %1970 = vset.pattern.permute.xlu0 0
    %1971 = vperm.xlu0 %1970, %v58
    %v1972 = vpop.permute.xlu0 %1971
    %1973 = vset.pattern.permute.xlu0 0
    %1974 = vperm.xlu0 %1973, %v59
    %v1975 = vpop.permute.xlu0 %1974
    %1976 = vset.pattern.permute.xlu0 0
    %1977 = vperm.xlu0 %1976, %v60
    %v1978 = vpop.permute.xlu0 %1977
    %1979 = vset.pattern.permute.xlu0 0
    %1980 = vperm.xlu0 %1979, %v61
    %v1981 = vpop.permute.xlu0 %1980
    %1982 = vset.pattern.permute.xlu0 0
    %1983 = vperm.xlu0 %1982, %v62
    %v1984 = vpop.permute.xlu0 %1983
    %1985 = vset.pattern.permute.xlu0 0
    %1986 = vperm.xlu0 %1985, %v63
    %v1987 = vpop.permute.xlu0 %1986
    %1988 = vset.pattern.permute.xlu0 0
    %1989 = vperm.xlu0 %1988, %v64
    %v1990 = vpop.permute.xlu0 %1989
    %1991 = vset.pattern.permute.xlu0 0
    %1992 = vperm.xlu0 %1991, %v65
    %v1993 = vpop.permute.xlu0 %1992
    %1994 = vset.pattern.permute.xlu0 0
    %1995 = vperm.xlu0 %1994, %v66
    %v1996 = vpop.permute.xlu0 %1995
    %1997 = vset.pattern.permute.xlu0 0
    %1998 = vperm.xlu0 %1997, %v67
    %v1999 = vpop.permute.xlu0 %1998
    %2000 = vset.pattern.permute.xlu0 0
    %2001 = vperm.xlu0 %2000, %v68
    %v2002 = vpop.permute.xlu0 %2001
    %2003 = vset.pattern.permute.xlu0 0
    %2004 = vperm.xlu0 %2003, %v69
    %v2005 = vpop.permute.xlu0 %2004
    %2006 = vset.pattern.permute.xlu0 0
    %2007 = vperm.xlu0 %2006, %v70
    %v2008 = vpop.permute.xlu0 %2007
    %2009 = vset.pattern.permute.xlu0 0
    %2010 = vperm.xlu0 %2009, %v71
    %v2011 = vpop.permute.xlu0 %2010
    %2012 = vset.pattern.permute.xlu0 0
    %2013 = vperm.xlu0 %2012, %v72
    %v2014 = vpop.permute.xlu0 %2013
    %2015 = vset.pattern.permute.xlu0 0
    %2016 = vperm.xlu0 %2015, %v73
    %v2017 = vpop.permute.xlu0 %2016
    %2018 = vset.pattern.permute.xlu0 0
    %2019 = vperm.xlu0 %2018, %v74
    %v2020 = vpop.permute.xlu0 %2019
    %2021 = vset.pattern.permute.xlu0 0
    %2022 = vperm.xlu0 %2021, %v75
    %v2023 = vpop.permute.xlu0 %2022
    %2024 = vset.pattern.permute.xlu0 0
    %2025 = vperm.xlu0 %2024, %v76
    %v2026 = vpop.permute.xlu0 %2025
    %2027 = vset.pattern.permute.xlu0 0
    %2028 = vperm.xlu0 %2027, %v77
    %v2029 = vpop.permute.xlu0 %2028
    %2030 = vset.pattern.permute.xlu0 0
    %2031 = vperm.xlu0 %2030, %v78
    %v2032 = vpop.permute.xlu0 %2031
    %2033 = vset.pattern.permute.xlu0 0
    %2034 = vperm.xlu0 %2033, %v79
    %v2035 = vpop.permute.xlu0 %2034
    %2036 = vset.pattern.permute.xlu0 0
    %2037 = vperm.xlu0 %2036, %v80
    %v2038 = vpop.permute.xlu0 %2037
    %2039 = vset.pattern.permute.xlu0 0
    %2040 = vperm.xlu0 %2039, %v81
    %v2041 = vpop.permute.xlu0 %2040
    %vm2042 = vcmp.eq.s32.totalorder %v1948, %v83
    %vm2043 = vcmp.eq.s32.totalorder %v1951, %v83
    %vm2044 = vcmp.eq.s32.totalorder %v1954, %v83
    %vm2045 = vcmp.eq.s32.totalorder %v1957, %v83
    %vm2046 = vcmp.eq.s32.totalorder %v1960, %v83
    %vm2047 = vcmp.eq.s32.totalorder %v1963, %v83
    %vm2048 = vcmp.eq.s32.totalorder %v1966, %v83
    %vm2049 = vcmp.eq.s32.totalorder %v1969, %v83
    %vm2050 = vcmp.eq.s32.totalorder %v1972, %v83
    %vm2051 = vcmp.eq.s32.totalorder %v1975, %v83
    %vm2052 = vcmp.eq.s32.totalorder %v1978, %v83
    %vm2053 = vcmp.eq.s32.totalorder %v1981, %v83
    %vm2054 = vcmp.eq.s32.totalorder %v1984, %v83
    %vm2055 = vcmp.eq.s32.totalorder %v1987, %v83
    %vm2056 = vcmp.eq.s32.totalorder %v1990, %v83
    %vm2057 = vcmp.eq.s32.totalorder %v1993, %v83
    %vm2058 = vcmp.eq.s32.totalorder %v1996, %v83
    %vm2059 = vcmp.eq.s32.totalorder %v1999, %v83
    %vm2060 = vcmp.eq.s32.totalorder %v2002, %v83
    %vm2061 = vcmp.eq.s32.totalorder %v2005, %v83
    %vm2062 = vcmp.eq.s32.totalorder %v2008, %v83
    %vm2063 = vcmp.eq.s32.totalorder %v2011, %v83
    %vm2064 = vcmp.eq.s32.totalorder %v2014, %v83
    %vm2065 = vcmp.eq.s32.totalorder %v2017, %v83
    %vm2066 = vcmp.eq.s32.totalorder %v2020, %v83
    %vm2067 = vcmp.eq.s32.totalorder %v2023, %v83
    %vm2068 = vcmp.eq.s32.totalorder %v2026, %v83
    %vm2069 = vcmp.eq.s32.totalorder %v2029, %v83
    %vm2070 = vcmp.eq.s32.totalorder %v2032, %v83
    %vm2071 = vcmp.eq.s32.totalorder %v2035, %v83
    %vm2072 = vcmp.eq.s32.totalorder %v2038, %v83
    %vm2073 = vcmp.eq.s32.totalorder %v2041, %v83
    %v2074 = vsel %vm2042, %v1468, 0.0
    %v2075 = vsel %vm2043, %v1472, 0.0
    %v2076 = vsel %vm2044, %v1476, 0.0
    %v2077 = vsel %vm2045, %v1480, 0.0
    %v2078 = vsel %vm2046, %v1484, 0.0
    %v2079 = vsel %vm2047, %v1488, 0.0
    %v2080 = vsel %vm2048, %v1492, 0.0
    %v2081 = vsel %vm2049, %v1496, 0.0
    %v2082 = vsel %vm2050, %v1500, 0.0
    %v2083 = vsel %vm2051, %v1504, 0.0
    %v2084 = vsel %vm2052, %v1508, 0.0
    %v2085 = vsel %vm2053, %v1512, 0.0
    %v2086 = vsel %vm2054, %v1516, 0.0
    %v2087 = vsel %vm2055, %v1520, 0.0
    %v2088 = vsel %vm2056, %v1524, 0.0
    %v2089 = vsel %vm2057, %v1528, 0.0
    %v2090 = vsel %vm2058, %v1532, 0.0
    %v2091 = vsel %vm2059, %v1536, 0.0
    %v2092 = vsel %vm2060, %v1540, 0.0
    %v2093 = vsel %vm2061, %v1544, 0.0
    %v2094 = vsel %vm2062, %v1548, 0.0
    %v2095 = vsel %vm2063, %v1552, 0.0
    %v2096 = vsel %vm2064, %v1556, 0.0
    %v2097 = vsel %vm2065, %v1560, 0.0
    %v2098 = vsel %vm2066, %v1564, 0.0
    %v2099 = vsel %vm2067, %v1568, 0.0
    %v2100 = vsel %vm2068, %v1572, 0.0
    %v2101 = vsel %vm2069, %v1576, 0.0
    %v2102 = vsel %vm2070, %v1580, 0.0
    %v2103 = vsel %vm2071, %v1584, 0.0
    %v2104 = vsel %vm2072, %v1588, 0.0
    %v2105 = vsel %vm2073, %v1592, 0.0
    %2106 = vadd.xlane.f32.xlu0 %v2074
    %v2107 = vpop.xlane.xlu0 %2106
    %2108 = vadd.xlane.f32.xlu0 %v2075
    %v2109 = vpop.xlane.xlu0 %2108
    %2110 = vadd.xlane.f32.xlu0 %v2076
    %v2111 = vpop.xlane.xlu0 %2110
    %2112 = vadd.xlane.f32.xlu0 %v2077
    %v2113 = vpop.xlane.xlu0 %2112
    %2114 = vadd.xlane.f32.xlu0 %v2078
    %v2115 = vpop.xlane.xlu0 %2114
    %2116 = vadd.xlane.f32.xlu0 %v2079
    %v2117 = vpop.xlane.xlu0 %2116
    %2118 = vadd.xlane.f32.xlu0 %v2080
    %v2119 = vpop.xlane.xlu0 %2118
    %2120 = vadd.xlane.f32.xlu0 %v2081
    %v2121 = vpop.xlane.xlu0 %2120
    %2122 = vadd.xlane.f32.xlu0 %v2082
    %v2123 = vpop.xlane.xlu0 %2122
    %2124 = vadd.xlane.f32.xlu0 %v2083
    %v2125 = vpop.xlane.xlu0 %2124
    %2126 = vadd.xlane.f32.xlu0 %v2084
    %v2127 = vpop.xlane.xlu0 %2126
    %2128 = vadd.xlane.f32.xlu0 %v2085
    %v2129 = vpop.xlane.xlu0 %2128
    %2130 = vadd.xlane.f32.xlu0 %v2086
    %v2131 = vpop.xlane.xlu0 %2130
    %2132 = vadd.xlane.f32.xlu0 %v2087
    %v2133 = vpop.xlane.xlu0 %2132
    %2134 = vadd.xlane.f32.xlu0 %v2088
    %v2135 = vpop.xlane.xlu0 %2134
    %2136 = vadd.xlane.f32.xlu0 %v2089
    %v2137 = vpop.xlane.xlu0 %2136
    %2138 = vadd.xlane.f32.xlu0 %v2090
    %v2139 = vpop.xlane.xlu0 %2138
    %2140 = vadd.xlane.f32.xlu0 %v2091
    %v2141 = vpop.xlane.xlu0 %2140
    %2142 = vadd.xlane.f32.xlu0 %v2092
    %v2143 = vpop.xlane.xlu0 %2142
    %2144 = vadd.xlane.f32.xlu0 %v2093
    %v2145 = vpop.xlane.xlu0 %2144
    %2146 = vadd.xlane.f32.xlu0 %v2094
    %v2147 = vpop.xlane.xlu0 %2146
    %2148 = vadd.xlane.f32.xlu0 %v2095
    %v2149 = vpop.xlane.xlu0 %2148
    %2150 = vadd.xlane.f32.xlu0 %v2096
    %v2151 = vpop.xlane.xlu0 %2150
    %2152 = vadd.xlane.f32.xlu0 %v2097
    %v2153 = vpop.xlane.xlu0 %2152
    %2154 = vadd.xlane.f32.xlu0 %v2098
    %v2155 = vpop.xlane.xlu0 %2154
    %2156 = vadd.xlane.f32.xlu0 %v2099
    %v2157 = vpop.xlane.xlu0 %2156
    %2158 = vadd.xlane.f32.xlu0 %v2100
    %v2159 = vpop.xlane.xlu0 %2158
    %2160 = vadd.xlane.f32.xlu0 %v2101
    %v2161 = vpop.xlane.xlu0 %2160
    %2162 = vadd.xlane.f32.xlu0 %v2102
    %v2163 = vpop.xlane.xlu0 %2162
    %2164 = vadd.xlane.f32.xlu0 %v2103
    %v2165 = vpop.xlane.xlu0 %2164
    %2166 = vadd.xlane.f32.xlu0 %v2104
    %v2167 = vpop.xlane.xlu0 %2166
    %2168 = vadd.xlane.f32.xlu0 %v2105
    %v2169 = vpop.xlane.xlu0 %2168
    %v2170 = vsub.f32 %v1914, %v2107
    %v2171 = vsub.f32 %v1915, %v2109
    %v2172 = vsub.f32 %v1916, %v2111
    %v2173 = vsub.f32 %v1917, %v2113
    %v2174 = vsub.f32 %v1918, %v2115
    %v2175 = vsub.f32 %v1919, %v2117
    %v2176 = vsub.f32 %v1920, %v2119
    %v2177 = vsub.f32 %v1921, %v2121
    %v2178 = vsub.f32 %v1922, %v2123
    %v2179 = vsub.f32 %v1923, %v2125
    %v2180 = vsub.f32 %v1924, %v2127
    %v2181 = vsub.f32 %v1925, %v2129
    %v2182 = vsub.f32 %v1926, %v2131
    %v2183 = vsub.f32 %v1927, %v2133
    %v2184 = vsub.f32 %v1928, %v2135
    %v2185 = vsub.f32 %v1929, %v2137
    %v2186 = vsub.f32 %v1930, %v2139
    %v2187 = vsub.f32 %v1931, %v2141
    %v2188 = vsub.f32 %v1932, %v2143
    %v2189 = vsub.f32 %v1933, %v2145
    %v2190 = vsub.f32 %v1934, %v2147
    %v2191 = vsub.f32 %v1935, %v2149
    %v2192 = vsub.f32 %v1936, %v2151
    %v2193 = vsub.f32 %v1937, %v2153
    %v2194 = vsub.f32 %v1938, %v2155
    %v2195 = vsub.f32 %v1939, %v2157
    %v2196 = vsub.f32 %v1940, %v2159
    %v2197 = vsub.f32 %v1941, %v2161
    %v2198 = vsub.f32 %v1942, %v2163
    %v2199 = vsub.f32 %v1943, %v2165
    %v2200 = vsub.f32 %v1944, %v2167
    %v2201 = vsub.f32 %v1945, %v2169
    %vm2202 = vcmask 7168
    %v2203 = vsel %vm2202, %v2170, 0.0
    %v2204 = vsel %vm2202, %v2171, 0.0
    %v2205 = vadd.f32 %v2203, %v2204
    %v2206 = vsel %vm2202, %v2172, 0.0
    %v2207 = vadd.f32 %v2205, %v2206
    %v2208 = vsel %vm2202, %v2173, 0.0
    %v2209 = vadd.f32 %v2207, %v2208
    %v2210 = vsel %vm2202, %v2174, 0.0
    %v2211 = vadd.f32 %v2209, %v2210
    %v2212 = vsel %vm2202, %v2175, 0.0
    %v2213 = vadd.f32 %v2211, %v2212
    %v2214 = vsel %vm2202, %v2176, 0.0
    %v2215 = vadd.f32 %v2213, %v2214
    %v2216 = vsel %vm2202, %v2177, 0.0
    %v2217 = vadd.f32 %v2215, %v2216
    %v2218 = vsel %vm2202, %v2178, 0.0
    %v2219 = vadd.f32 %v2217, %v2218
    %v2220 = vsel %vm2202, %v2179, 0.0
    %v2221 = vadd.f32 %v2219, %v2220
    %v2222 = vsel %vm2202, %v2180, 0.0
    %v2223 = vadd.f32 %v2221, %v2222
    %v2224 = vsel %vm2202, %v2181, 0.0
    %v2225 = vadd.f32 %v2223, %v2224
    %v2226 = vsel %vm2202, %v2182, 0.0
    %v2227 = vadd.f32 %v2225, %v2226
    %v2228 = vsel %vm2202, %v2183, 0.0
    %v2229 = vadd.f32 %v2227, %v2228
    %v2230 = vsel %vm2202, %v2184, 0.0
    %v2231 = vadd.f32 %v2229, %v2230
    %v2232 = vsel %vm2202, %v2185, 0.0
    %v2233 = vadd.f32 %v2231, %v2232
    %v2234 = vsel %vm2202, %v2186, 0.0
    %v2235 = vadd.f32 %v2233, %v2234
    %v2236 = vsel %vm2202, %v2187, 0.0
    %v2237 = vadd.f32 %v2235, %v2236
    %v2238 = vsel %vm2202, %v2188, 0.0
    %v2239 = vadd.f32 %v2237, %v2238
    %v2240 = vsel %vm2202, %v2189, 0.0
    %v2241 = vadd.f32 %v2239, %v2240
    %v2242 = vsel %vm2202, %v2190, 0.0
    %v2243 = vadd.f32 %v2241, %v2242
    %v2244 = vsel %vm2202, %v2191, 0.0
    %v2245 = vadd.f32 %v2243, %v2244
    %v2246 = vsel %vm2202, %v2192, 0.0
    %v2247 = vadd.f32 %v2245, %v2246
    %v2248 = vsel %vm2202, %v2193, 0.0
    %v2249 = vadd.f32 %v2247, %v2248
    %v2250 = vsel %vm2202, %v2194, 0.0
    %v2251 = vadd.f32 %v2249, %v2250
    %v2252 = vsel %vm2202, %v2195, 0.0
    %v2253 = vadd.f32 %v2251, %v2252
    %v2254 = vsel %vm2202, %v2196, 0.0
    %v2255 = vadd.f32 %v2253, %v2254
    %v2256 = vsel %vm2202, %v2197, 0.0
    %v2257 = vadd.f32 %v2255, %v2256
    %v2258 = vsel %vm2202, %v2198, 0.0
    %v2259 = vadd.f32 %v2257, %v2258
    %v2260 = vsel %vm2202, %v2199, 0.0
    %v2261 = vadd.f32 %v2259, %v2260
    %v2262 = vsel %vm2202, %v2200, 0.0
    %v2263 = vadd.f32 %v2261, %v2262
    %v2264 = vsel %vm2202, %v2201, 0.0
    %v2265 = vadd.f32 %v2263, %v2264
    %2266 = vadd.xlane.f32.xlu0 %v2265
    %v2267 = vpop.xlane.xlu0 %2266
    %v2268 = vrot.slane %v2267, 4
    %v2269 = vadd.f32 %v2267, %v2268
    %v2270 = vrot.slane %v2269, 2
    %v2271 = vadd.f32 %v2269, %v2270
    %v2272 = vrot.slane %v2271, 1
    %v2273 = vadd.f32 %v2271, %v2272
    %s2274 = vtos %v2273
    %s2275 = smul.f32 %s2274, 0.00390625
    %s2276 = scalar_lea.smem [#allocation5], 0
    %2277 = sst [smem:[%s2276]] %s2275
    // Predicated region
    $region14: #{tpu_custom_call.1} parent=1 // pred_check
      _
    $region15: #{tpu_custom_call.1} parent=1 // pred_check_branch
      %2279 = sbr.rel (0) target = $region17
    $region16: #{tpu_custom_call.1} parent=1 // pred_region
      %2281 = vsyncadd [#allocation3], 0
      %s2282 = sshll.u32 [#allocation2], 4
      %s2283 = int_to_ptr.vmem [resolvable:$true] %s2282
      %s2284 = sshll.u32 %s3, 4
      %s2285 = int_to_ptr.hbm [resolvable:$true] %s2284
      %2290 = dma.vmem_to_hbm [thread:$0]  %s2283, 4096, %s2285, [#allocation3], 128, 128, 8
    $region17: #{tpu_custom_call.1} parent=1 // pred_fallthru
      _
    // Predicated region
    $region18: #{tpu_custom_call.1} parent=1 // pred_check
      _
    $region19: #{tpu_custom_call.1} parent=1 // pred_check_branch
      %2292 = sbr.rel (0) target = $region21
    $region20: #{tpu_custom_call.1} parent=1 // pred_region
      %2294 = vsyncadd [#allocation4], 0
      %s2296 = sshll.u32 %s4, 4
      %s2297 = int_to_ptr.hbm [resolvable:$true] %s2296
      %2299 = dma.smem_to_hbm [#allocation5], 16, %s2297, [#allocation4]
    $region21: #{tpu_custom_call.1} parent=1 // pred_fallthru
      _
    // Predicated region
    $region22: #{tpu_custom_call.1} parent=1 // pred_check
      _
    $region23: #{tpu_custom_call.1} parent=1 // pred_check_branch
      %2301 = sbr.rel (0) target = $region25
    $region24: #{tpu_custom_call.1} parent=1 // pred_region
      %2303 = dma.done [#allocation3], 4096
    $region25: #{tpu_custom_call.1} parent=1 // pred_fallthru
      _
    // Predicated region
    $region26: #{tpu_custom_call.1} parent=1 // pred_check
      _
    $region27: #{tpu_custom_call.1} parent=1 // pred_check_branch
      %2305 = sbr.rel (0) target = $region29
    $region28: #{tpu_custom_call.1} parent=1 // pred_region
      %2307 = dma.done [#allocation4], 16
    $region29: #{tpu_custom_call.1} parent=1 // pred_fallthru
      _
    %2308 = sfence
    %2309 = vsyncpa [#allocation3], 1
    %2310 = vsyncpa [#allocation4], 1

</llo_original>
